<compile_context>
chip_gen: v7x
topology: tpu7x:2x2x1
jax: 0.10.0
libtpu: 0.0.40
codegen_flags: <defaults>
</compile_context>

<pallas_src>
import functools
import math

import jax
import jax.numpy as jnp
import numpy as np
from jax.experimental import pallas as pl
from jax.experimental.pallas import tpu as pltpu

# cfg.focal_loss_gamma / cfg.focal_loss_alpha (standard RetinaNet values).
FOCAL_GAMMA = 2.0
FOCAL_ALPHA = 0.25

_EPS = 1e-6
_LOG_EPS = math.log(_EPS)            # log(1e-6)
_LOG_1M_EPS = math.log(1.0 - _EPS)   # log(1 - 1e-6)
_PACK = 8                            # original rows packed per lane-dense row


def _focal_loss_kernel(t_ref, x_ref, o_ref, acc_ref, *, gamma, alpha,
                       num_classes, block_rows, packed_rows,
                       per_core_blocks, needs_mask):
    """One grid step: (TM8, 8*C) lane-dense logits + (TM8, 8) shifted targets."""
    c = pl.program_id(0)   # TensorCore split ("parallel")
    i = pl.program_id(1)   # row-block reduction axis ("arbitrary")
    width = _PACK * num_classes

    @pl.when(i == 0)
    def _():
        acc_ref[...] = jnp.zeros_like(acc_ref)

    def tile_loss(x_raw, st_tile):
        x = x_raw.astype(jnp.float32)                              # (TM8, W)
        col = jax.lax.broadcasted_iota(jnp.int32, (block_rows, width), 1)
        # Expand shifted targets (TM8, 8) -> (TM8, W): column j belongs to
        # sub-row j // C; built with static compare+selects (no int div/mod).
        stf = st_tile[:, _PACK - 1:_PACK]
        for r in range(_PACK - 2, -1, -1):
            stf = jnp.where(col < (r + 1) * num_classes,
                            st_tile[:, r:r + 1], stf)
        pos = col == stf           # this element is the target class
        neg = stf >= 0             # valid (non-ignore) target row

        p = jnp.clip(jax.nn.sigmoid(x), _EPS, 1.0 - _EPS)
        logp = jnp.log(p)
        # log(1 - sigmoid(x)) == log(sigmoid(x)) - x; the clip reproduces the
        # reference's clamp(p, eps, 1-eps) semantics (2 EUP ops/elem, not 3).
        log1mp = jnp.clip(logp - x, _LOG_EPS, _LOG_1M_EPS)

        if gamma == 2.0:
            one_m_p = 1.0 - p
            mod_pos = one_m_p * one_m_p      # cheap VPU squares, no EUP pow
            mod_neg = p * p
        else:
            mod_pos = jnp.exp(gamma * log1mp)
            mod_neg = jnp.exp(gamma * logp)

        # loss = -pos*alpha*(1-p)^g*log(p) - neg*(1-alpha)*p^g*log(1-p)
        return jnp.where(pos, (-alpha) * mod_pos * logp,
                         jnp.where(neg, -(1.0 - alpha) * mod_neg * log1mp,
                                   0.0))

    if not needs_mask:
        # Every block is full and owned by exactly one core: no masking code.
        acc_ref[...] = acc_ref[...] + tile_loss(x_ref[...], t_ref[...])
    else:
        b = c * per_core_blocks + i          # logical (unclamped) block id
        is_full = (b + 1) * block_rows <= packed_rows

        @pl.when(is_full)
        def _():
            acc_ref[...] = acc_ref[...] + tile_loss(x_ref[...], t_ref[...])

        @pl.when(jnp.logical_not(is_full))
        def _():
            # Partial trailing block, or a duplicate block on the non-owning
            # core: zero logits BEFORE any transcendental, force targets to -1
            # so invalid rows contribute exactly zero.
            prow = b * block_rows + jax.lax.broadcasted_iota(
                jnp.int32, (block_rows, 1), 0)
            rv = prow < packed_rows
            x = jnp.where(rv, x_ref[...].astype(jnp.float32), 0.0)
            st = jnp.where(rv, t_ref[...], -1)
            acc_ref[...] = acc_ref[...] + tile_loss(x, st)

    @pl.when(i == pl.num_programs(1) - 1)
    def _():
        # Single cross-lane reduce per core; scalar splat into the (1,1,1)
        # per-core partial (robust scalar -> block store).
        o_ref[...] = jnp.zeros_like(o_ref) + jnp.sum(acc_ref[...])


def focal_loss(logits, targets, avg_factor, *, gamma=FOCAL_GAMMA,
               alpha=FOCAL_ALPHA, tm=8192, num_cores=2):
    """Equivalent of FocalLoss.forward(logits, targets, avg_factor)."""
    M, C = logits.shape

    # Pad rows to a multiple of _PACK (<= 7 rows) so the lane-dense repack
    # (M, C) -> (M/8, 8*C) is a plain row-major reshape.  Padded targets = -1
    # so those rows contribute exactly zero loss.
    m_pad = pl.cdiv(M, _PACK) * _PACK
    t32 = targets.astype(jnp.int32)
    if m_pad != M:
        logits = jnp.pad(logits, ((0, m_pad - M), (0, 0)))
        t32 = jnp.pad(t32, (0, m_pad - M), constant_values=-1)

    packed_rows = m_pad // _PACK
    width = _PACK * C
    x_packed = logits.reshape(packed_rows, width)
    # "Shifted" targets: column index inside the packed row that the positive
    # class occupies (t + C*subrow), or -1 for ignore/negative rows.
    t2d = t32.reshape(packed_rows, _PACK)
    offs = (jnp.arange(_PACK, dtype=jnp.int32) * C)[None, :]
    st = jnp.where(t2d >= 0, t2d + offs, -1)

    # Row-block tile (in packed rows).  Multiple of 16 so bf16 inputs keep the
    # native (16, 128) packed sublane tiling; free for f32.
    tm8 = max(1, min(tm // _PACK, packed_rows))
    if tm8 < packed_rows:
        tm8 = max(8, (tm8 // 16) * 16)
    blocks_total = pl.cdiv(packed_rows, tm8)
    per_core = pl.cdiv(blocks_total, num_cores)
    needs_mask = (packed_rows % tm8 != 0) or (per_core * num_cores != blocks_total)

    def row_map(c, i):
        # Clamp so duplicate iterations on a non-owning core still read a valid
        # block (their contribution is masked to zero in-kernel).
        return (jnp.minimum(c * per_core + i, blocks_total - 1), 0)

    kernel = functools.partial(
        _focal_loss_kernel, gamma=float(gamma), alpha=float(alpha),
        num_classes=C, block_rows=tm8, packed_rows=packed_rows,
        per_core_blocks=per_core, needs_mask=needs_mask)

    bytes_accessed = (x_packed.size * x_packed.dtype.itemsize
                      + st.size * 4 + num_cores * 4)
    partials = pl.pallas_call(
        kernel,
        out_shape=jax.ShapeDtypeStruct((num_cores, 1, 1), jnp.float32),
        grid_spec=pltpu.PrefetchScalarGridSpec(
            num_scalar_prefetch=0,
            grid=(num_cores, per_core),
            in_specs=[
                pl.BlockSpec((tm8, _PACK), row_map),   # shifted targets
                pl.BlockSpec((tm8, width), row_map),   # lane-dense logits
            ],
            out_specs=pl.BlockSpec((1, 1, 1), lambda c, i: (c, 0, 0)),
            scratch_shapes=[pltpu.VMEM((tm8, width), jnp.float32)],
        ),
        compiler_params=pltpu.CompilerParams(
            dimension_semantics=("parallel", "arbitrary")),
        cost_estimate=pl.CostEstimate(
            flops=20 * M * C, transcendentals=2 * M * C,
            bytes_accessed=bytes_accessed),
    )(st, x_packed)

    # Per-core partials -> scalar, then the avg_factor division (JAX glue).
    return jnp.sum(partials) / avg_factor


def _focal_loss_ref(logits, targets, avg_factor,
                    gamma=FOCAL_GAMMA, alpha=FOCAL_ALPHA):
    """Pure-JAX reference mirroring the PyTorch forward, for verification."""
    num_classes = logits.shape[1]
    class_range = jnp.arange(num_classes, dtype=targets.dtype)[None, :]
    t = targets[:, None]
    p = jax.nn.sigmoid(logits.astype(jnp.float32))
    p = jnp.clip(p, 1e-06, 1.0 - 1e-06)
    term1 = (1.0 - p) ** gamma * jnp.log(p)
    term2 = p ** gamma * jnp.log(1.0 - p)
    loss = (-(t == class_range).astype(jnp.float32) * term1 * alpha
            - ((t != class_range) & (t >= 0)).astype(jnp.float32)
            * term2 * (1.0 - alpha))
    return loss.sum() / avg_factor


if __name__ == "__main__":
    key = jax.random.PRNGKey(0)
    k1, k2, k3, k4 = jax.random.split(key, 4)

    def make_case(kx, kt, M, C=80):
        logits = jax.random.normal(kx, (M, C), dtype=jnp.float32) * 2.0
        # Labels in [-1, 79]: -1 = negative sample, [0, 79] = positive class.
        targets = jax.random.randint(kt, (M,), -1, C, dtype=jnp.int32)
        num_pos = jnp.maximum(jnp.sum(targets >= 0), 1).astype(jnp.float32)
        return logits, targets, num_pos

    def check(logits, targets, af, **kw):
        ref = jax.block_until_ready(_focal_loss_ref(logits, targets, af))
        out = jax.block_until_ready(focal_loss(logits, targets, af, **kw))
        np.testing.assert_allclose(np.asarray(out), np.asarray(ref),
                                   rtol=1e-5, atol=1e-5)

    # Case 1: M=200, default big tile -> grid (2,1); core 1 gets a fully
    # masked duplicate block.
    logits1, targets1, af1 = make_case(k1, k2, 200)
    check(logits1, targets1, af1)

    # Case 2: small tile -> multi-block accumulation + partial trailing block.
    check(logits1, targets1, af1, tm=64)

    # Case 3: M not a multiple of 8 -> exercises the <=7-row pad path.
    logits3, targets3, af3 = make_case(k3, k4, 203)
    check(logits3, targets3, af3, tm=64)

    # Case 4: even block split, no masking code generated (pure fast path,
    # both cores do real work).
    logits4, targets4, af4 = make_case(k1, k2, 256)
    check(logits4, targets4, af4, tm=128)

    print("KERNEL_OK")
</pallas_src>

<mosaic_0001>
module attributes {stable_mosaic.version = 11 : i64} {
  func.func @_focal_loss_kernel(%arg0: i32, %arg1: i32, %arg2: memref<25x8xi32, #tpu.memory_space<vmem>>, %arg3: memref<25x640xf32, #tpu.memory_space<vmem>>, %arg4: memref<1x1x1xf32, #tpu.memory_space<vmem>>, %arg5: memref<25x640xf32, #tpu.memory_space<vmem>>) attributes {dimension_semantics = [#tpu.dimension_semantics<parallel>, #tpu.dimension_semantics<arbitrary>], iteration_bounds = array<i64: 2, 1>, scalar_prefetch = 0 : i64, scratch_operands = 1 : i64, tpu.core_type = #tpu.core_type<tc>, window_params = [{transform_indices = @transform_0, window_bounds = array<i64: 25, 8>}, {transform_indices = @transform_1, window_bounds = array<i64: 25, 640>}, {transform_indices = @transform_2, window_bounds = array<i64: 1, 1, 1>}]} {
    %c0_i32 = arith.constant 0 : i32
    %0 = arith.cmpi eq, %arg1, %c0_i32 : i32
    %1 = arith.extui %0 : i1 to i32
    %c0_i32_0 = arith.constant 0 : i32
    %2 = arith.cmpi ne, %1, %c0_i32_0 : i32
    scf.if %2 {
      %cst = arith.constant 0.000000e+00 : f32
      %16 = vector.broadcast %cst : f32 to vector<25x640xf32>
      %c0 = arith.constant 0 : index
      %c0_7 = arith.constant 0 : index
      %17 = vector.load %arg5[%c0, %c0_7] : memref<25x640xf32, #tpu.memory_space<vmem>>, vector<25x640xf32>
      tpu.vector_store %arg5[%c0, %c0_7], %16 {strides = array<i32>} : memref<25x640xf32, #tpu.memory_space<vmem>>, vector<25x640xf32>,
    } else {
    }
    %c1_i32 = arith.constant 1 : i32
    %3 = arith.muli %arg0, %c1_i32 : i32
    %4 = arith.addi %3, %arg1 : i32
    %c1_i32_1 = arith.constant 1 : i32
    %5 = arith.addi %4, %c1_i32_1 : i32
    %c25_i32 = arith.constant 25 : i32
    %6 = arith.muli %5, %c25_i32 : i32
    %c25_i32_2 = arith.constant 25 : i32
    %7 = arith.cmpi sle, %6, %c25_i32_2 : i32
    %8 = arith.extui %7 : i1 to i32
    %c0_i32_3 = arith.constant 0 : i32
    %9 = arith.cmpi ne, %8, %c0_i32_3 : i32
    scf.if %9 {
      %c0 = arith.constant 0 : index
      %c0_7 = arith.constant 0 : index
      %16 = vector.load %arg5[%c0, %c0_7] : memref<25x640xf32, #tpu.memory_space<vmem>>, vector<25x640xf32>
      %c0_8 = arith.constant 0 : index
      %c0_9 = arith.constant 0 : index
      %17 = vector.load %arg3[%c0_8, %c0_9] : memref<25x640xf32, #tpu.memory_space<vmem>>, vector<25x640xf32>
      %c0_10 = arith.constant 0 : index
      %c0_11 = arith.constant 0 : index
      %18 = vector.load %arg2[%c0_10, %c0_11] : memref<25x8xi32, #tpu.memory_space<vmem>>, vector<25x8xi32>
      %19 = tpu.iota {dimensions = array<i32: 1>} : vector<25x640xi32>
      %20 = vector.extract_strided_slice %18 {offsets = [0, 7], sizes = [25, 1], strides = [1, 1]} : vector<25x8xi32> to vector<25x1xi32>
      %c560_i32 = arith.constant 560 : i32
      %21 = vector.broadcast %c560_i32 : i32 to vector<25x640xi32>
      %22 = arith.cmpi slt, %19, %21 : vector<25x640xi32>
      %23 = vector.extract_strided_slice %18 {offsets = [0, 6], sizes = [25, 1], strides = [1, 1]} : vector<25x8xi32> to vector<25x1xi32>
      %24 = vector.shape_cast %23 : vector<25x1xi32> to vector<25x1xi32>
      %25 = vector.broadcast %24 : vector<25x1xi32> to vector<25x640xi32>
      %26 = vector.shape_cast %20 : vector<25x1xi32> to vector<25x1xi32>
      %27 = vector.broadcast %26 : vector<25x1xi32> to vector<25x640xi32>
      %28 = arith.select %22, %25, %27 : vector<25x640xi1>, vector<25x640xi32>
      %c480_i32 = arith.constant 480 : i32
      %29 = vector.broadcast %c480_i32 : i32 to vector<25x640xi32>
      %30 = arith.cmpi slt, %19, %29 : vector<25x640xi32>
      %31 = vector.extract_strided_slice %18 {offsets = [0, 5], sizes = [25, 1], strides = [1, 1]} : vector<25x8xi32> to vector<25x1xi32>
      %32 = vector.shape_cast %31 : vector<25x1xi32> to vector<25x1xi32>
      %33 = vector.broadcast %32 : vector<25x1xi32> to vector<25x640xi32>
      %34 = arith.select %30, %33, %28 : vector<25x640xi1>, vector<25x640xi32>
      %c400_i32 = arith.constant 400 : i32
      %35 = vector.broadcast %c400_i32 : i32 to vector<25x640xi32>
      %36 = arith.cmpi slt, %19, %35 : vector<25x640xi32>
      %37 = vector.extract_strided_slice %18 {offsets = [0, 4], sizes = [25, 1], strides = [1, 1]} : vector<25x8xi32> to vector<25x1xi32>
      %38 = vector.shape_cast %37 : vector<25x1xi32> to vector<25x1xi32>
      %39 = vector.broadcast %38 : vector<25x1xi32> to vector<25x640xi32>
      %40 = arith.select %36, %39, %34 : vector<25x640xi1>, vector<25x640xi32>
      %c320_i32 = arith.constant 320 : i32
      %41 = vector.broadcast %c320_i32 : i32 to vector<25x640xi32>
      %42 = arith.cmpi slt, %19, %41 : vector<25x640xi32>
      %43 = vector.extract_strided_slice %18 {offsets = [0, 3], sizes = [25, 1], strides = [1, 1]} : vector<25x8xi32> to vector<25x1xi32>
      %44 = vector.shape_cast %43 : vector<25x1xi32> to vector<25x1xi32>
      %45 = vector.broadcast %44 : vector<25x1xi32> to vector<25x640xi32>
      %46 = arith.select %42, %45, %40 : vector<25x640xi1>, vector<25x640xi32>
      %c240_i32 = arith.constant 240 : i32
      %47 = vector.broadcast %c240_i32 : i32 to vector<25x640xi32>
      %48 = arith.cmpi slt, %19, %47 : vector<25x640xi32>
      %49 = vector.extract_strided_slice %18 {offsets = [0, 2], sizes = [25, 1], strides = [1, 1]} : vector<25x8xi32> to vector<25x1xi32>
      %50 = vector.shape_cast %49 : vector<25x1xi32> to vector<25x1xi32>
      %51 = vector.broadcast %50 : vector<25x1xi32> to vector<25x640xi32>
      %52 = arith.select %48, %51, %46 : vector<25x640xi1>, vector<25x640xi32>
      %c160_i32 = arith.constant 160 : i32
      %53 = vector.broadcast %c160_i32 : i32 to vector<25x640xi32>
      %54 = arith.cmpi slt, %19, %53 : vector<25x640xi32>
      %55 = vector.extract_strided_slice %18 {offsets = [0, 1], sizes = [25, 1], strides = [1, 1]} : vector<25x8xi32> to vector<25x1xi32>
      %56 = vector.shape_cast %55 : vector<25x1xi32> to vector<25x1xi32>
      %57 = vector.broadcast %56 : vector<25x1xi32> to vector<25x640xi32>
      %58 = arith.select %54, %57, %52 : vector<25x640xi1>, vector<25x640xi32>
      %c80_i32 = arith.constant 80 : i32
      %59 = vector.broadcast %c80_i32 : i32 to vector<25x640xi32>
      %60 = arith.cmpi slt, %19, %59 : vector<25x640xi32>
      %61 = vector.extract_strided_slice %18 {offsets = [0, 0], sizes = [25, 1], strides = [1, 1]} : vector<25x8xi32> to vector<25x1xi32>
      %62 = vector.shape_cast %61 : vector<25x1xi32> to vector<25x1xi32>
      %63 = vector.broadcast %62 : vector<25x1xi32> to vector<25x640xi32>
      %64 = arith.select %60, %63, %58 : vector<25x640xi1>, vector<25x640xi32>
      %65 = arith.cmpi eq, %19, %64 : vector<25x640xi32>
      %c0_i32_12 = arith.constant 0 : i32
      %66 = vector.broadcast %c0_i32_12 : i32 to vector<25x640xi32>
      %67 = arith.cmpi sge, %64, %66 : vector<25x640xi32>
      %68 = arith.negf %17 : vector<25x640xf32>
      %69 = math.exp %68 : vector<25x640xf32>
      %cst = arith.constant 1.000000e+00 : f32
      %70 = vector.broadcast %cst : f32 to vector<25x640xf32>
      %71 = arith.addf %70, %69 : vector<25x640xf32>
      %72 = arith.divf %70, %71 : vector<25x640xf32>
      %cst_13 = arith.constant 9.99999997E-7 : f32
      %cst_14 = arith.constant 0.999998986 : f32
      %73 = vector.broadcast %cst_13 : f32 to vector<25x640xf32>
      %74 = arith.maximumf %73, %72 : vector<25x640xf32>
      %75 = vector.broadcast %cst_14 : f32 to vector<25x640xf32>
      %76 = arith.minimumf %75, %74 : vector<25x640xf32>
      %77 = math.log %76 : vector<25x640xf32>
      %78 = arith.subf %77, %17 : vector<25x640xf32>
      %cst_15 = arith.constant -13.8155107 : f32
      %cst_16 = arith.constant -1.00000045E-6 : f32
      %79 = vector.broadcast %cst_15 : f32 to vector<25x640xf32>
      %80 = arith.maximumf %79, %78 : vector<25x640xf32>
      %81 = vector.broadcast %cst_16 : f32 to vector<25x640xf32>
      %82 = arith.minimumf %81, %80 : vector<25x640xf32>
      %cst_17 = arith.constant 1.000000e+00 : f32
      %83 = vector.broadcast %cst_17 : f32 to vector<25x640xf32>
      %84 = arith.subf %83, %76 : vector<25x640xf32>
      %85 = arith.mulf %84, %84 : vector<25x640xf32>
      %86 = arith.mulf %76, %76 : vector<25x640xf32>
      %cst_18 = arith.constant -2.500000e-01 : f32
      %87 = vector.broadcast %cst_18 : f32 to vector<25x640xf32>
      %88 = arith.mulf %87, %85 : vector<25x640xf32>
      %89 = arith.mulf %88, %77 : vector<25x640xf32>
      %cst_19 = arith.constant -7.500000e-01 : f32
      %90 = vector.broadcast %cst_19 : f32 to vector<25x640xf32>
      %91 = arith.mulf %90, %86 : vector<25x640xf32>
      %92 = arith.mulf %91, %82 : vector<25x640xf32>
      %cst_20 = arith.constant 0.000000e+00 : f32
      %93 = vector.broadcast %cst_20 : f32 to vector<25x640xf32>
      %94 = arith.select %67, %92, %93 : vector<25x640xi1>, vector<25x640xf32>
      %95 = arith.select %65, %89, %94 : vector<25x640xi1>, vector<25x640xf32>
      %96 = arith.addf %16, %95 : vector<25x640xf32>
      %c0_21 = arith.constant 0 : index
      %c0_22 = arith.constant 0 : index
      %97 = vector.load %arg5[%c0_21, %c0_22] : memref<25x640xf32, #tpu.memory_space<vmem>>, vector<25x640xf32>
      tpu.vector_store %arg5[%c0_21, %c0_22], %96 {strides = array<i32>} : memref<25x640xf32, #tpu.memory_space<vmem>>, vector<25x640xf32>,
    } else {
    }
    %true = arith.constant true
    %10 = arith.xori %7, %true : i1
    %11 = arith.extui %10 : i1 to i32
    %c0_i32_4 = arith.constant 0 : i32
    %12 = arith.cmpi ne, %11, %c0_i32_4 : i32
    scf.if %12 {
      %c25_i32_7 = arith.constant 25 : i32
      %16 = arith.muli %4, %c25_i32_7 : i32
      %17 = tpu.iota {dimensions = array<i32: 0>} : vector<25x1xi32>
      %18 = vector.broadcast %16 : i32 to vector<25x1xi32>
      %19 = arith.addi %18, %17 : vector<25x1xi32>
      %c25_i32_8 = arith.constant 25 : i32
      %20 = vector.broadcast %c25_i32_8 : i32 to vector<25x1xi32>
      %21 = arith.cmpi slt, %19, %20 : vector<25x1xi32>
      %c0 = arith.constant 0 : index
      %c0_9 = arith.constant 0 : index
      %22 = vector.load %arg3[%c0, %c0_9] : memref<25x640xf32, #tpu.memory_space<vmem>>, vector<25x640xf32>
      %cst = arith.constant 0.000000e+00 : f32
      %23 = vector.shape_cast %21 : vector<25x1xi1> to vector<25x1xi1>
      %24 = vector.broadcast %23 : vector<25x1xi1> to vector<25x640xi1>
      %25 = vector.broadcast %cst : f32 to vector<25x640xf32>
      %26 = arith.select %24, %22, %25 : vector<25x640xi1>, vector<25x640xf32>
      %c0_10 = arith.constant 0 : index
      %c0_11 = arith.constant 0 : index
      %27 = vector.load %arg2[%c0_10, %c0_11] : memref<25x8xi32, #tpu.memory_space<vmem>>, vector<25x8xi32>
      %c-1_i32 = arith.constant -1 : i32
      %28 = vector.shape_cast %21 : vector<25x1xi1> to vector<25x1xi1>
      %29 = vector.broadcast %28 : vector<25x1xi1> to vector<25x8xi1>
      %30 = vector.broadcast %c-1_i32 : i32 to vector<25x8xi32>
      %31 = arith.select %29, %27, %30 : vector<25x8xi1>, vector<25x8xi32>
      %c0_12 = arith.constant 0 : index
      %c0_13 = arith.constant 0 : index
      %32 = vector.load %arg5[%c0_12, %c0_13] : memref<25x640xf32, #tpu.memory_space<vmem>>, vector<25x640xf32>
      %33 = tpu.iota {dimensions = array<i32: 1>} : vector<25x640xi32>
      %34 = vector.extract_strided_slice %31 {offsets = [0, 7], sizes = [25, 1], strides = [1, 1]} : vector<25x8xi32> to vector<25x1xi32>
      %c560_i32 = arith.constant 560 : i32
      %35 = vector.broadcast %c560_i32 : i32 to vector<25x640xi32>
      %36 = arith.cmpi slt, %33, %35 : vector<25x640xi32>
      %37 = vector.extract_strided_slice %31 {offsets = [0, 6], sizes = [25, 1], strides = [1, 1]} : vector<25x8xi32> to vector<25x1xi32>
      %38 = vector.shape_cast %37 : vector<25x1xi32> to vector<25x1xi32>
      %39 = vector.broadcast %38 : vector<25x1xi32> to vector<25x640xi32>
      %40 = vector.shape_cast %34 : vector<25x1xi32> to vector<25x1xi32>
      %41 = vector.broadcast %40 : vector<25x1xi32> to vector<25x640xi32>
      %42 = arith.select %36, %39, %41 : vector<25x640xi1>, vector<25x640xi32>
      %c480_i32 = arith.constant 480 : i32
      %43 = vector.broadcast %c480_i32 : i32 to vector<25x640xi32>
      %44 = arith.cmpi slt, %33, %43 : vector<25x640xi32>
      %45 = vector.extract_strided_slice %31 {offsets = [0, 5], sizes = [25, 1], strides = [1, 1]} : vector<25x8xi32> to vector<25x1xi32>
      %46 = vector.shape_cast %45 : vector<25x1xi32> to vector<25x1xi32>
      %47 = vector.broadcast %46 : vector<25x1xi32> to vector<25x640xi32>
      %48 = arith.select %44, %47, %42 : vector<25x640xi1>, vector<25x640xi32>
      %c400_i32 = arith.constant 400 : i32
      %49 = vector.broadcast %c400_i32 : i32 to vector<25x640xi32>
      %50 = arith.cmpi slt, %33, %49 : vector<25x640xi32>
      %51 = vector.extract_strided_slice %31 {offsets = [0, 4], sizes = [25, 1], strides = [1, 1]} : vector<25x8xi32> to vector<25x1xi32>
      %52 = vector.shape_cast %51 : vector<25x1xi32> to vector<25x1xi32>
      %53 = vector.broadcast %52 : vector<25x1xi32> to vector<25x640xi32>
      %54 = arith.select %50, %53, %48 : vector<25x640xi1>, vector<25x640xi32>
      %c320_i32 = arith.constant 320 : i32
      %55 = vector.broadcast %c320_i32 : i32 to vector<25x640xi32>
      %56 = arith.cmpi slt, %33, %55 : vector<25x640xi32>
      %57 = vector.extract_strided_slice %31 {offsets = [0, 3], sizes = [25, 1], strides = [1, 1]} : vector<25x8xi32> to vector<25x1xi32>
      %58 = vector.shape_cast %57 : vector<25x1xi32> to vector<25x1xi32>
      %59 = vector.broadcast %58 : vector<25x1xi32> to vector<25x640xi32>
      %60 = arith.select %56, %59, %54 : vector<25x640xi1>, vector<25x640xi32>
      %c240_i32 = arith.constant 240 : i32
      %61 = vector.broadcast %c240_i32 : i32 to vector<25x640xi32>
      %62 = arith.cmpi slt, %33, %61 : vector<25x640xi32>
      %63 = vector.extract_strided_slice %31 {offsets = [0, 2], sizes = [25, 1], strides = [1, 1]} : vector<25x8xi32> to vector<25x1xi32>
      %64 = vector.shape_cast %63 : vector<25x1xi32> to vector<25x1xi32>
      %65 = vector.broadcast %64 : vector<25x1xi32> to vector<25x640xi32>
      %66 = arith.select %62, %65, %60 : vector<25x640xi1>, vector<25x640xi32>
      %c160_i32 = arith.constant 160 : i32
      %67 = vector.broadcast %c160_i32 : i32 to vector<25x640xi32>
      %68 = arith.cmpi slt, %33, %67 : vector<25x640xi32>
      %69 = vector.extract_strided_slice %31 {offsets = [0, 1], sizes = [25, 1], strides = [1, 1]} : vector<25x8xi32> to vector<25x1xi32>
      %70 = vector.shape_cast %69 : vector<25x1xi32> to vector<25x1xi32>
      %71 = vector.broadcast %70 : vector<25x1xi32> to vector<25x640xi32>
      %72 = arith.select %68, %71, %66 : vector<25x640xi1>, vector<25x640xi32>
      %c80_i32 = arith.constant 80 : i32
      %73 = vector.broadcast %c80_i32 : i32 to vector<25x640xi32>
      %74 = arith.cmpi slt, %33, %73 : vector<25x640xi32>
      %75 = vector.extract_strided_slice %31 {offsets = [0, 0], sizes = [25, 1], strides = [1, 1]} : vector<25x8xi32> to vector<25x1xi32>
      %76 = vector.shape_cast %75 : vector<25x1xi32> to vector<25x1xi32>
      %77 = vector.broadcast %76 : vector<25x1xi32> to vector<25x640xi32>
      %78 = arith.select %74, %77, %72 : vector<25x640xi1>, vector<25x640xi32>
      %79 = arith.cmpi eq, %33, %78 : vector<25x640xi32>
      %c0_i32_14 = arith.constant 0 : i32
      %80 = vector.broadcast %c0_i32_14 : i32 to vector<25x640xi32>
      %81 = arith.cmpi sge, %78, %80 : vector<25x640xi32>
      %82 = arith.negf %26 : vector<25x640xf32>
      %83 = math.exp %82 : vector<25x640xf32>
      %cst_15 = arith.constant 1.000000e+00 : f32
      %84 = vector.broadcast %cst_15 : f32 to vector<25x640xf32>
      %85 = arith.addf %84, %83 : vector<25x640xf32>
      %86 = arith.divf %84, %85 : vector<25x640xf32>
      %cst_16 = arith.constant 9.99999997E-7 : f32
      %cst_17 = arith.constant 0.999998986 : f32
      %87 = vector.broadcast %cst_16 : f32 to vector<25x640xf32>
      %88 = arith.maximumf %87, %86 : vector<25x640xf32>
      %89 = vector.broadcast %cst_17 : f32 to vector<25x640xf32>
      %90 = arith.minimumf %89, %88 : vector<25x640xf32>
      %91 = math.log %90 : vector<25x640xf32>
      %92 = arith.subf %91, %26 : vector<25x640xf32>
      %cst_18 = arith.constant -13.8155107 : f32
      %cst_19 = arith.constant -1.00000045E-6 : f32
      %93 = vector.broadcast %cst_18 : f32 to vector<25x640xf32>
      %94 = arith.maximumf %93, %92 : vector<25x640xf32>
      %95 = vector.broadcast %cst_19 : f32 to vector<25x640xf32>
      %96 = arith.minimumf %95, %94 : vector<25x640xf32>
      %cst_20 = arith.constant 1.000000e+00 : f32
      %97 = vector.broadcast %cst_20 : f32 to vector<25x640xf32>
      %98 = arith.subf %97, %90 : vector<25x640xf32>
      %99 = arith.mulf %98, %98 : vector<25x640xf32>
      %100 = arith.mulf %90, %90 : vector<25x640xf32>
      %cst_21 = arith.constant -2.500000e-01 : f32
      %101 = vector.broadcast %cst_21 : f32 to vector<25x640xf32>
      %102 = arith.mulf %101, %99 : vector<25x640xf32>
      %103 = arith.mulf %102, %91 : vector<25x640xf32>
      %cst_22 = arith.constant -7.500000e-01 : f32
      %104 = vector.broadcast %cst_22 : f32 to vector<25x640xf32>
      %105 = arith.mulf %104, %100 : vector<25x640xf32>
      %106 = arith.mulf %105, %96 : vector<25x640xf32>
      %cst_23 = arith.constant 0.000000e+00 : f32
      %107 = vector.broadcast %cst_23 : f32 to vector<25x640xf32>
      %108 = arith.select %81, %106, %107 : vector<25x640xi1>, vector<25x640xf32>
      %109 = arith.select %79, %103, %108 : vector<25x640xi1>, vector<25x640xf32>
      %110 = arith.addf %32, %109 : vector<25x640xf32>
      %c0_24 = arith.constant 0 : index
      %c0_25 = arith.constant 0 : index
      %111 = vector.load %arg5[%c0_24, %c0_25] : memref<25x640xf32, #tpu.memory_space<vmem>>, vector<25x640xf32>
      tpu.vector_store %arg5[%c0_24, %c0_25], %110 {strides = array<i32>} : memref<25x640xf32, #tpu.memory_space<vmem>>, vector<25x640xf32>,
    } else {
    }
    %c0_i32_5 = arith.constant 0 : i32
    %13 = arith.cmpi eq, %arg1, %c0_i32_5 : i32
    %14 = arith.extui %13 : i1 to i32
    %c0_i32_6 = arith.constant 0 : i32
    %15 = arith.cmpi ne, %14, %c0_i32_6 : i32
    scf.if %15 {
      %cst = arith.constant 0.000000e+00 : f32
      %16 = vector.broadcast %cst : f32 to vector<1x1x1xf32>
      %c0 = arith.constant 0 : index
      %c0_7 = arith.constant 0 : index
      %17 = vector.load %arg5[%c0, %c0_7] : memref<25x640xf32, #tpu.memory_space<vmem>>, vector<25x640xf32>
      %18 = vector.shape_cast %17 : vector<25x640xf32> to vector<1x25x640xf32>
      %cst_8 = arith.constant dense<0.000000e+00> : vector<1xf32>
      %19 = vector.multi_reduction <add>, %18, %cst_8 [1, 2] : vector<1x25x640xf32> to vector<1xf32>
      %20 = vector.shape_cast %19 : vector<1xf32> to vector<1x1x1xf32>
      %21 = vector.extract %20[0, 0, 0] : f32 from vector<1x1x1xf32>
      %22 = vector.broadcast %21 : f32 to vector<1x1x1xf32>
      %23 = arith.addf %16, %22 : vector<1x1x1xf32>
      %c0_9 = arith.constant 0 : index
      %c0_10 = arith.constant 0 : index
      %c0_11 = arith.constant 0 : index
      %24 = vector.load %arg4[%c0_9, %c0_10, %c0_11] : memref<1x1x1xf32, #tpu.memory_space<vmem>>, vector<1x1x1xf32>
      tpu.vector_store %arg4[%c0_9, %c0_10, %c0_11], %23 {strides = array<i32>} : memref<1x1x1xf32, #tpu.memory_space<vmem>>, vector<1x1x1xf32>,
    } else {
    }
    return
  }
  func.func @transform_0(%arg0: i32, %arg1: i32) -> (i32, i32) {
    %c1_i32 = arith.constant 1 : i32
    %0 = arith.muli %arg0, %c1_i32 : i32
    %1 = arith.addi %0, %arg1 : i32
    %c0_i32 = arith.constant 0 : i32
    %2 = arith.minsi %1, %c0_i32 : i32
    %c0_i32_0 = arith.constant 0 : i32
    %c0_i32_1 = arith.constant 0 : i32
    return %2, %c0_i32_0 : i32, i32
  }
  func.func @transform_1(%arg0: i32, %arg1: i32) -> (i32, i32) {
    %c1_i32 = arith.constant 1 : i32
    %0 = arith.muli %arg0, %c1_i32 : i32
    %1 = arith.addi %0, %arg1 : i32
    %c0_i32 = arith.constant 0 : i32
    %2 = arith.minsi %1, %c0_i32 : i32
    %c0_i32_0 = arith.constant 0 : i32
    %c0_i32_1 = arith.constant 0 : i32
    return %2, %c0_i32_0 : i32, i32
  }
  func.func @transform_2(%arg0: i32, %arg1: i32) -> (i32, i32, i32) {
    %c0_i32 = arith.constant 0 : i32
    %c0_i32_0 = arith.constant 0 : i32
    %c0_i32_1 = arith.constant 0 : i32
    return %arg0, %c0_i32, %c0_i32_0 : i32, i32, i32
  }
}

</mosaic_0001>

<llo_original>
// kernel: tpu_custom_call.1
$region0: #{tpu_custom_call.1}
  #allocation0 [shape = 'u32[]', space=smem, size = 0x4, offset = 0x4, fixed_abs, tag = 'smem constant byte address 0x4 - core index']
  #allocation1 [shape = 'u32[144,128]{1,0:T(1,128)}', space=vmem, size = 0x12000, scoped, tag = 'internal scratch']
  #allocation2 [shape = 'f32[25,640]{1,0:T(8,128)}', space=vmem, size = 0x14000, scoped, tag = 'scratch operand']
  %s0 = inlined_call_operand.vmem [shape: s32[25,8], index: 0, kind: input, shape index: {}]
  %s1 = inlined_call_operand.hbm [shape: f32[25,640], index: 1, kind: input, shape index: {}]
  %s2 = inlined_call_operand.vmem [shape: f32[2,1,1], index: 2, kind: output, shape index: {}]
  %s3 = sld [smem:[#allocation0]]
  $region61: #{tpu_custom_call.1} parent=0
    _
  %s5 = ssub.s32 1, %s3
  %s6 = scalar_select 0, %s5, %s3
  $region1: #{tpu_custom_call.1} parent=0
    #allocation3 [shape = 'u8[163840]{0}', space=vmem, size = 0x28000, scoped, tag = 'input window, operand 1']
    #allocation4 [shape = 's32[2]{0}', space=sflag, size = 0x8, scoped, tag = 'scoped memory for tpu_custom_call.1']
    %7 = vsyncpa [#allocation4], 0
    %s8 = scalar_lea.sflag [#allocation4], 1
    %9 = vsyncpa %s8, 0
    loop: start=0, step=1, limit=4
    $region2: #{tpu_custom_call.1} parent=1 // loop_pre_header
      _
    $region3: #{tpu_custom_call.1} parent=1 // loop_header
      %s11 = sphi 0, %s15
      %p12 = scmp.ge.s32.totalorder %s11, 4
      %s18 = sphi 0, %s30
      %s19 = sphi 0, %s26
      %s20 = sphi 0, %s18
      %s21 = sphi 0, %s19
      %s22 = sphi 0, %s20
      %s23 = sphi 0, %s21
      %s39 = sphi 0, %s41
      %s42 = sphi 0, %s39
      %s43 = sphi 0, %s42
      %s59 = sphi 0, %s43
      %s71 = sphi 0, %s73
      %s74 = sphi 0, %s71
      %s75 = sphi 0, %s74
      %s91 = sphi 0, %s75
      %s97 = sphi 0, %s99
      %s100 = sphi 0, %s97
      %s101 = sphi 0, %s100
      %s117 = sphi 0, %s101
    $region4: #{tpu_custom_call.1} parent=1 // loop_header_branch
      %14 = sbr.rel (%p12) target = $region8
    $region5: #{tpu_custom_call.1} parent=1 // loop_body
      %s16 = ssub.s32 %s11, 1
      %s17 = ssub.s32 %s11, 2
      %s24 = sadd.s32 1, %s19
      %p25 = scmp.ge.s32.totalorder %s24, 1
      %s26 = scalar_select %p25, 0, %s24
      %s27 = sadd.s32 1, %s18
      %s28 = scalar_select %p25, %s27, %s18
      %p29 = scmp.ge.s32.totalorder %s28, 2
      %s30 = scalar_select %p29, 0, %s28
      %s31 = sadd.s32 %s18, %s19
      %p32 = scmp.lt.s32.totalorder %s31, 0
      %s33 = scalar_select %p32, %s31, 0
      %s34 = sadd.s32 %s30, %s26
      %p35 = scmp.lt.s32.totalorder %s34, 0
      %s36 = scalar_select %p35, %s34, 0
      %s37 = ssub.s32 %s33, %s36
      %p38 = scmp.eq.s32.totalorder %s37, 0
      %s40 = sadd.s32 %s39, 1
      %s41 = scalar_select %p38, %s39, %s40
      %p44 = pneg %p38
      %p45 = scmp.eq.s32.totalorder %s11, 1
      %p46 = por %p44, %p45
      %p47 = scmp.ne.s32.totalorder %s39, %s42
      %p48 = scmp.eq.s32.totalorder %s11, 0
      %p49 = por %p47, %p48
      %p50 = scmp.ne.s32.totalorder %s39, %s42
      %p51 = scmp.eq.s32.totalorder %s16, 1
      %p52 = por %p50, %p51
      %p53 = scmp.ne.s32.totalorder %s42, %s43
      %p54 = scmp.eq.s32.totalorder %s16, 0
      %p55 = por %p53, %p54
      %p56 = scmp.ne.s32.totalorder %s42, %s43
      %p57 = scmp.eq.s32.totalorder %s17, 1
      %p58 = por %p56, %p57
      %p60 = scmp.ne.s32.totalorder %s43, %s59
      %p61 = scmp.eq.s32.totalorder %s17, 0
      %p62 = por %p60, %p61
      %s63 = sadd.s32 %s18, %s19
      %p64 = scmp.lt.s32.totalorder %s63, 0
      %s65 = scalar_select %p64, %s63, 0
      %s66 = sadd.s32 %s30, %s26
      %p67 = scmp.lt.s32.totalorder %s66, 0
      %s68 = scalar_select %p67, %s66, 0
      %s69 = ssub.s32 %s65, %s68
      %p70 = scmp.eq.s32.totalorder %s69, 0
      %s72 = sadd.s32 %s71, 1
      %s73 = scalar_select %p70, %s71, %s72
      %p76 = pneg %p70
      %p77 = scmp.eq.s32.totalorder %s11, 1
      %p78 = por %p76, %p77
      %p79 = scmp.ne.s32.totalorder %s71, %s74
      %p80 = scmp.eq.s32.totalorder %s11, 0
      %p81 = por %p79, %p80
      %p82 = scmp.ne.s32.totalorder %s71, %s74
      %p83 = scmp.eq.s32.totalorder %s16, 1
      %p84 = por %p82, %p83
      %p85 = scmp.ne.s32.totalorder %s74, %s75
      %p86 = scmp.eq.s32.totalorder %s16, 0
      %p87 = por %p85, %p86
      %p88 = scmp.ne.s32.totalorder %s74, %s75
      %p89 = scmp.eq.s32.totalorder %s17, 1
      %p90 = por %p88, %p89
      %p92 = scmp.ne.s32.totalorder %s75, %s91
      %p93 = scmp.eq.s32.totalorder %s17, 0
      %p94 = por %p92, %p93
      %s95 = ssub.s32 %s18, %s30
      %p96 = scmp.eq.s32.totalorder %s95, 0
      %s98 = sadd.s32 %s97, 1
      %s99 = scalar_select %p96, %s97, %s98
      %p102 = pneg %p96
      %p103 = scmp.eq.s32.totalorder %s11, 1
      %p104 = por %p102, %p103
      %p105 = scmp.ne.s32.totalorder %s97, %s100
      %p106 = scmp.eq.s32.totalorder %s11, 0
      %p107 = por %p105, %p106
      %p108 = scmp.ne.s32.totalorder %s97, %s100
      %p109 = scmp.eq.s32.totalorder %s16, 1
      %p110 = por %p108, %p109
      %p111 = scmp.ne.s32.totalorder %s100, %s101
      %p112 = scmp.eq.s32.totalorder %s16, 0
      %p113 = por %p111, %p112
      %p114 = scmp.ne.s32.totalorder %s100, %s101
      %p115 = scmp.eq.s32.totalorder %s17, 1
      %p116 = por %p114, %p115
      %p118 = scmp.ne.s32.totalorder %s101, %s117
      %p119 = scmp.eq.s32.totalorder %s17, 0
      %p120 = por %p118, %p119
      %p121 = scmp.le.s32.totalorder 1, %s11
      %p122 = scmp.lt.s32.totalorder %s11, 3
      %p123 = pnand %p121, %p122
      %p124 = pneg %p123
      // Predicated region
      $region9: #{tpu_custom_call.1} parent=5 // pred_check
        _
      $region10: #{tpu_custom_call.1} parent=5 // pred_check_branch
        %126 = sbr.rel (%p123) target = $region12
      $region11: #{tpu_custom_call.1} parent=5 // pred_region
        %s127 = ssub.s32 %s11, 1
      $region12: #{tpu_custom_call.1} parent=5 // pred_fallthru
        _
      %p128 = scmp.lt.s32.totalorder %s11, 2
      // Predicated region
      $region13: #{tpu_custom_call.1} parent=5 // pred_check
        %p129 = pneg %p128
      $region14: #{tpu_custom_call.1} parent=5 // pred_check_branch
        %131 = sbr.rel (%p129) target = $region16
      $region15: #{tpu_custom_call.1} parent=5 // pred_region
        // Predicated region
        $region17: #{tpu_custom_call.1} parent=15 // pred_check
          %p132 = pneg %p49
        $region18: #{tpu_custom_call.1} parent=15 // pred_check_branch
          %134 = sbr.rel (%p132) target = $region20
        $region19: #{tpu_custom_call.1} parent=15 // pred_region
          %s135 = sadd.s32 %s18, %s19
          %p136 = scmp.lt.s32.totalorder %s135, 0
          %s137 = scalar_select %p136, %s135, 0
          %s138 = smul.u32 4, %s137
          %p139 = scmp.lt.s32.totalorder %s138, 3
          %s140 = scalar_select %p139, %s138, 3
          %s141 = smul.addr %s140, 8
          %s142 = scalar_lea.vmem %s0, %s141
          %s143 = sadd.s32 %s18, %s19
          %p144 = scmp.lt.s32.totalorder %s143, 0
          %s145 = scalar_select %p144, %s143, 0
          %s146 = smul.u32 4, %s145
        $region20: #{tpu_custom_call.1} parent=15 // pred_fallthru
          _
        // Predicated region
        $region21: #{tpu_custom_call.1} parent=15 // pred_check
          %p147 = pneg %p81
        $region22: #{tpu_custom_call.1} parent=15 // pred_check_branch
          %149 = sbr.rel (%p147) target = $region24
        $region23: #{tpu_custom_call.1} parent=15 // pred_region
          %s150 = sand.u32 %s71, 1
          %s151 = scalar_lea.sflag [#allocation4], %s150
          %s152 = sand.u32 %s71, 1
          %s153 = smul.addr %s152, 160
          %s154 = scalar_lea.vmem [#allocation3], %s153
          %s155 = sadd.s32 %s18, %s19
          %p156 = scmp.lt.s32.totalorder %s155, 0
          %s157 = scalar_select %p156, %s155, 0
          %s158 = smul.u32 4, %s157
          %s160 = ssub.s32 2560, 2560
          %161 = vsyncadd %s151, %s160
          %s162 = smul.addr %s158, 5
          %s163 = smul.addr %s162, 128
          %s164 = scalar_lea.hbm %s1, %s163
          %s165 = sshll.u32 %s154, 4
          %s166 = int_to_ptr.vmem [resolvable:$true] %s165
          %171 = dma.hbm_to_vmem [thread:$0]  %s164, 2560, %s166, %s151, 640, 640, 40
        $region24: #{tpu_custom_call.1} parent=15 // pred_fallthru
          _
      $region16: #{tpu_custom_call.1} parent=5 // pred_fallthru
        _
      %p172 = scmp.le.s32.totalorder 1, %s11
      %p173 = scmp.lt.s32.totalorder %s11, 3
      %p174 = pnand %p172, %p173
      %p175 = pneg %p174
      // Predicated region
      $region25: #{tpu_custom_call.1} parent=5 // pred_check
        _
      $region26: #{tpu_custom_call.1} parent=5 // pred_check_branch
        %177 = sbr.rel (%p174) target = $region28
      $region27: #{tpu_custom_call.1} parent=5 // pred_region
        %s178 = ssub.s32 %s11, 1
        %s179 = sand.u32 %s74, 1
        %s180 = scalar_lea.sflag [#allocation4], %s179
        %s181 = sand.u32 %s74, 1
        %s182 = smul.addr %s181, 160
        %s183 = scalar_lea.vmem [#allocation3], %s182
        // Predicated region
        $region29: #{tpu_custom_call.1} parent=27 // pred_check
          %p184 = pneg %p87
        $region30: #{tpu_custom_call.1} parent=27 // pred_check_branch
          %186 = sbr.rel (%p184) target = $region32
        $region31: #{tpu_custom_call.1} parent=27 // pred_region
          %187 = dma.done %s180, 2560
        $region32: #{tpu_custom_call.1} parent=27 // pred_fallthru
          _
        %s188 = sadd.s32 %s20, %s21
        %p189 = scmp.lt.s32.totalorder %s188, 0
        %s190 = scalar_select %p189, %s188, 0
        %s191 = smul.u32 4, %s190
        %p192 = scmp.lt.s32.totalorder %s191, 3
        %s193 = scalar_select %p192, %s191, 3
        %s194 = smul.addr %s193, 8
        %s195 = scalar_lea.vmem %s0, %s194
        %p196 = pneg %p55
        %p197 = pneg %p52
        %s198 = sand.u32 %s74, 1
        %s199 = scalar_lea.sflag [#allocation4], %s198
        %s200 = sand.u32 %s74, 1
        %s201 = smul.addr %s200, 160
        %s202 = scalar_lea.vmem [#allocation3], %s201
        %p203 = pneg %p87
        %p204 = pneg %p84
        %p205 = pneg %p113
        %p206 = pneg %p110
        %p207 = scmp.lt.s32.totalorder %s20, 1
        %s208 = scalar_select %p207, %s20, 1
        %s209 = scalar_lea.vmem %s2, %s208
        %s210 = sadd.s32 %s20, %s21
        %p211 = scmp.lt.s32.totalorder %s210, 0
        %s212 = scalar_select %p211, %s210, 0
        %s213 = smul.u32 4, %s212
        %p214 = scmp.lt.s32.totalorder %s213, 3
        %s215 = scalar_select %p214, %s213, 3
        %s216 = smul.addr %s215, 8
        %s217 = scalar_lea.vmem %s0, %s216
        %s218 = sadd.s32 %s20, %s21
        %p219 = scmp.lt.s32.totalorder %s218, 0
        %s220 = scalar_select %p219, %s218, 0
        %s221 = smul.u32 4, %s220
        %s222 = sadd.s32 %s20, %s21
        %p223 = scmp.lt.s32.totalorder %s222, 0
        %s224 = scalar_select %p223, %s222, 0
        %s225 = smul.u32 4, %s224
        %p226 = scmp.lt.s32.totalorder %s20, 1
        %s227 = scalar_select %p226, %s20, 1
        %s228 = scalar_lea.vmem %s2, %s227
        %p229 = scmp.eq.s32.totalorder %s21, 0
        // Predicated region
        $region33: #{tpu_custom_call.1} parent=27 // pred_check
          %p230 = pneg %p229
        $region34: #{tpu_custom_call.1} parent=27 // pred_check_branch
          %232 = sbr.rel (%p230) target = $region36
        $region35: #{tpu_custom_call.1} parent=27 // pred_region
          %233 = vst [vmem:[#allocation2] sm:$0xff] 0.0
          %234 = vst [vmem:[#allocation2 + $0x8] sm:$0xff] 0.0
          %235 = vst [vmem:[#allocation2 + $0x10] sm:$0xff] 0.0
          %236 = vst [vmem:[#allocation2 + $0x18] sm:$0xff] 0.0
          %237 = vst [vmem:[#allocation2 + $0x20] sm:$0xff] 0.0
          %238 = vst [vmem:[#allocation2 + $0x28] sm:$0xff] 0.0
          %239 = vst [vmem:[#allocation2 + $0x30] sm:$0xff] 0.0
          %240 = vst [vmem:[#allocation2 + $0x38] sm:$0xff] 0.0
          %241 = vst [vmem:[#allocation2 + $0x40] sm:$0xff] 0.0
          %242 = vst [vmem:[#allocation2 + $0x48] sm:$0xff] 0.0
          %243 = vst [vmem:[#allocation2 + $0x50] sm:$0xff] 0.0
          %244 = vst [vmem:[#allocation2 + $0x58] sm:$0xff] 0.0
          %245 = vst [vmem:[#allocation2 + $0x60] sm:$0xff] 0.0
          %246 = vst [vmem:[#allocation2 + $0x68] sm:$0xff] 0.0
          %247 = vst [vmem:[#allocation2 + $0x70] sm:$0xff] 0.0
          %248 = vst [vmem:[#allocation2 + $0x78] sm:$0x1] 0.0
          %249 = vst [vmem:[#allocation2 + $0x80] sm:$0x1] 0.0
          %250 = vst [vmem:[#allocation2 + $0x88] sm:$0x1] 0.0
          %251 = vst [vmem:[#allocation2 + $0x90] sm:$0x1] 0.0
          %252 = vst [vmem:[#allocation2 + $0x98] sm:$0x1] 0.0
        $region36: #{tpu_custom_call.1} parent=27 // pred_fallthru
          _
        %s253 = sadd.s32 %s20, %s21
        %s254 = sadd.s32 %s253, 1
        %s255 = smul.u32 %s254, 25
        %p256 = scmp.le.s32.totalorder %s255, 25
        // Predicated region
        $region37: #{tpu_custom_call.1} parent=27 // pred_check
          %p257 = pneg %p256
        $region38: #{tpu_custom_call.1} parent=27 // pred_check_branch
          %259 = sbr.rel (%p257) target = $region40
        $region39: #{tpu_custom_call.1} parent=27 // pred_region
          %v260 = vld [vmem:[#allocation2] sm:$0xff]
          %v261 = vld [vmem:[#allocation2 + $0x8] sm:$0xff]
          %v262 = vld [vmem:[#allocation2 + $0x10] sm:$0xff]
          %v263 = vld [vmem:[#allocation2 + $0x18] sm:$0xff]
          %v264 = vld [vmem:[#allocation2 + $0x20] sm:$0xff]
          %v265 = vld [vmem:[#allocation2 + $0x28] sm:$0xff]
          %v266 = vld [vmem:[#allocation2 + $0x30] sm:$0xff]
          %v267 = vld [vmem:[#allocation2 + $0x38] sm:$0xff]
          %v268 = vld [vmem:[#allocation2 + $0x40] sm:$0xff]
          %v269 = vld [vmem:[#allocation2 + $0x48] sm:$0xff]
          %v270 = vld [vmem:[#allocation2 + $0x50] sm:$0xff]
          %v271 = vld [vmem:[#allocation2 + $0x58] sm:$0xff]
          %v272 = vld [vmem:[#allocation2 + $0x60] sm:$0xff]
          %v273 = vld [vmem:[#allocation2 + $0x68] sm:$0xff]
          %v274 = vld [vmem:[#allocation2 + $0x70] sm:$0xff]
          %v275 = vld [vmem:[#allocation2 + $0x78] sm:$0x1]
          %v276 = vld [vmem:[#allocation2 + $0x80] sm:$0x1]
          %v277 = vld [vmem:[#allocation2 + $0x88] sm:$0x1]
          %v278 = vld [vmem:[#allocation2 + $0x90] sm:$0x1]
          %v279 = vld [vmem:[#allocation2 + $0x98] sm:$0x1]
          %v280 = vld [vmem:[%s183] sm:$0xff]
          %v281 = vld [vmem:[%s183 + $0x8] sm:$0xff]
          %v282 = vld [vmem:[%s183 + $0x10] sm:$0xff]
          %v283 = vld [vmem:[%s183 + $0x18] sm:$0xff]
          %v284 = vld [vmem:[%s183 + $0x20] sm:$0xff]
          %v285 = vld [vmem:[%s183 + $0x28] sm:$0xff]
          %v286 = vld [vmem:[%s183 + $0x30] sm:$0xff]
          %v287 = vld [vmem:[%s183 + $0x38] sm:$0xff]
          %v288 = vld [vmem:[%s183 + $0x40] sm:$0xff]
          %v289 = vld [vmem:[%s183 + $0x48] sm:$0xff]
          %v290 = vld [vmem:[%s183 + $0x50] sm:$0xff]
          %v291 = vld [vmem:[%s183 + $0x58] sm:$0xff]
          %v292 = vld [vmem:[%s183 + $0x60] sm:$0xff]
          %v293 = vld [vmem:[%s183 + $0x68] sm:$0xff]
          %v294 = vld [vmem:[%s183 + $0x70] sm:$0xff]
          %v295 = vld [vmem:[%s183 + $0x78] sm:$0x1]
          %v296 = vld [vmem:[%s183 + $0x80] sm:$0x1]
          %v297 = vld [vmem:[%s183 + $0x88] sm:$0x1]
          %v298 = vld [vmem:[%s183 + $0x90] sm:$0x1]
          %v299 = vld [vmem:[%s183 + $0x98] sm:$0x1]
          %v300 = vld [vmem:[%s217] sm:$0xff]
          %v301 = vld [vmem:[%s217 + $0x8] sm:$0xff]
          %v302 = vld [vmem:[%s217 + $0x10] sm:$0xff]
          %v303 = vld [vmem:[%s217 + $0x18] sm:$0x1]
          %v304 = vlaneseq
          %v305 = vand.u32 %v304, 127
          %v306 = vadd.s32 %v305, 128
          %v307 = vadd.s32 %v305, 256
          %v308 = vadd.s32 %v305, 384
          %v309 = vadd.s32 %v305, 512
          %vm310 = vcmp.lt.s32.totalorder %v305, 560
          %vm311 = vcmp.lt.s32.totalorder %v306, 560
          %vm312 = vcmp.lt.s32.totalorder %v307, 560
          %vm313 = vcmp.lt.s32.totalorder %v308, 560
          %vm314 = vcmp.lt.s32.totalorder %v309, 560
          %315 = vset.pattern.permute.xlu0 6
          %316 = vperm.xlu0 %315, %v300
          %v317 = vpop.permute.xlu0 %316
          %318 = vset.pattern.permute.xlu0 6
          %319 = vperm.xlu0 %318, %v301
          %v320 = vpop.permute.xlu0 %319
          %321 = vset.pattern.permute.xlu0 6
          %322 = vperm.xlu0 %321, %v302
          %v323 = vpop.permute.xlu0 %322
          %324 = vset.pattern.permute.xlu0 6
          %325 = vperm.xlu0 %324, %v303
          %v326 = vpop.permute.xlu0 %325
          %327 = vset.pattern.permute.xlu0 7
          %328 = vperm.xlu0 %327, %v300
          %v329 = vpop.permute.xlu0 %328
          %330 = vset.pattern.permute.xlu0 7
          %331 = vperm.xlu0 %330, %v301
          %v332 = vpop.permute.xlu0 %331
          %333 = vset.pattern.permute.xlu0 7
          %334 = vperm.xlu0 %333, %v302
          %v335 = vpop.permute.xlu0 %334
          %336 = vset.pattern.permute.xlu0 7
          %337 = vperm.xlu0 %336, %v303
          %v338 = vpop.permute.xlu0 %337
          %v339 = vsel %vm310, %v317, %v329
          %v340 = vsel %vm311, %v317, %v329
          %v341 = vsel %vm312, %v317, %v329
          %v342 = vsel %vm313, %v317, %v329
          %v343 = vsel %vm314, %v317, %v329
          %v344 = vsel %vm310, %v320, %v332
          %v345 = vsel %vm311, %v320, %v332
          %v346 = vsel %vm312, %v320, %v332
          %v347 = vsel %vm313, %v320, %v332
          %v348 = vsel %vm314, %v320, %v332
          %v349 = vsel %vm310, %v323, %v335
          %v350 = vsel %vm311, %v323, %v335
          %v351 = vsel %vm312, %v323, %v335
          %v352 = vsel %vm313, %v323, %v335
          %v353 = vsel %vm314, %v323, %v335
          %v354 = vsel %vm310, %v326, %v338
          %v355 = vsel %vm311, %v326, %v338
          %v356 = vsel %vm312, %v326, %v338
          %v357 = vsel %vm313, %v326, %v338
          %v358 = vsel %vm314, %v326, %v338
          %vm359 = vcmp.lt.s32.totalorder %v305, 480
          %vm360 = vcmp.lt.s32.totalorder %v306, 480
          %vm361 = vcmp.lt.s32.totalorder %v307, 480
          %vm362 = vcmp.lt.s32.totalorder %v308, 480
          %vm363 = vcmp.lt.s32.totalorder %v309, 480
          %364 = vset.pattern.permute.xlu0 5
          %365 = vperm.xlu0 %364, %v300
          %v366 = vpop.permute.xlu0 %365
          %367 = vset.pattern.permute.xlu0 5
          %368 = vperm.xlu0 %367, %v301
          %v369 = vpop.permute.xlu0 %368
          %370 = vset.pattern.permute.xlu0 5
          %371 = vperm.xlu0 %370, %v302
          %v372 = vpop.permute.xlu0 %371
          %373 = vset.pattern.permute.xlu0 5
          %374 = vperm.xlu0 %373, %v303
          %v375 = vpop.permute.xlu0 %374
          %v376 = vsel %vm359, %v366, %v339
          %v377 = vsel %vm360, %v366, %v340
          %v378 = vsel %vm361, %v366, %v341
          %v379 = vsel %vm362, %v366, %v342
          %v380 = vsel %vm363, %v366, %v343
          %v381 = vsel %vm359, %v369, %v344
          %v382 = vsel %vm360, %v369, %v345
          %v383 = vsel %vm361, %v369, %v346
          %v384 = vsel %vm362, %v369, %v347
          %v385 = vsel %vm363, %v369, %v348
          %v386 = vsel %vm359, %v372, %v349
          %v387 = vsel %vm360, %v372, %v350
          %v388 = vsel %vm361, %v372, %v351
          %v389 = vsel %vm362, %v372, %v352
          %v390 = vsel %vm363, %v372, %v353
          %v391 = vsel %vm359, %v375, %v354
          %v392 = vsel %vm360, %v375, %v355
          %v393 = vsel %vm361, %v375, %v356
          %v394 = vsel %vm362, %v375, %v357
          %v395 = vsel %vm363, %v375, %v358
          %vm396 = vcmp.lt.s32.totalorder %v305, 400
          %vm397 = vcmp.lt.s32.totalorder %v306, 400
          %vm398 = vcmp.lt.s32.totalorder %v307, 400
          %vm399 = vcmp.lt.s32.totalorder %v308, 400
          %vm400 = vcmp.lt.s32.totalorder %v309, 400
          %401 = vset.pattern.permute.xlu0 4
          %402 = vperm.xlu0 %401, %v300
          %v403 = vpop.permute.xlu0 %402
          %404 = vset.pattern.permute.xlu0 4
          %405 = vperm.xlu0 %404, %v301
          %v406 = vpop.permute.xlu0 %405
          %407 = vset.pattern.permute.xlu0 4
          %408 = vperm.xlu0 %407, %v302
          %v409 = vpop.permute.xlu0 %408
          %410 = vset.pattern.permute.xlu0 4
          %411 = vperm.xlu0 %410, %v303
          %v412 = vpop.permute.xlu0 %411
          %v413 = vsel %vm396, %v403, %v376
          %v414 = vsel %vm397, %v403, %v377
          %v415 = vsel %vm398, %v403, %v378
          %v416 = vsel %vm399, %v403, %v379
          %v417 = vsel %vm400, %v403, %v380
          %v418 = vsel %vm396, %v406, %v381
          %v419 = vsel %vm397, %v406, %v382
          %v420 = vsel %vm398, %v406, %v383
          %v421 = vsel %vm399, %v406, %v384
          %v422 = vsel %vm400, %v406, %v385
          %v423 = vsel %vm396, %v409, %v386
          %v424 = vsel %vm397, %v409, %v387
          %v425 = vsel %vm398, %v409, %v388
          %v426 = vsel %vm399, %v409, %v389
          %v427 = vsel %vm400, %v409, %v390
          %v428 = vsel %vm396, %v412, %v391
          %v429 = vsel %vm397, %v412, %v392
          %v430 = vsel %vm398, %v412, %v393
          %v431 = vsel %vm399, %v412, %v394
          %v432 = vsel %vm400, %v412, %v395
          %vm433 = vcmp.lt.s32.totalorder %v305, 320
          %vm434 = vcmp.lt.s32.totalorder %v306, 320
          %vm435 = vcmp.lt.s32.totalorder %v307, 320
          %vm436 = vcmp.lt.s32.totalorder %v308, 320
          %vm437 = vcmp.lt.s32.totalorder %v309, 320
          %438 = vset.pattern.permute.xlu0 3
          %439 = vperm.xlu0 %438, %v300
          %v440 = vpop.permute.xlu0 %439
          %441 = vset.pattern.permute.xlu0 3
          %442 = vperm.xlu0 %441, %v301
          %v443 = vpop.permute.xlu0 %442
          %444 = vset.pattern.permute.xlu0 3
          %445 = vperm.xlu0 %444, %v302
          %v446 = vpop.permute.xlu0 %445
          %447 = vset.pattern.permute.xlu0 3
          %448 = vperm.xlu0 %447, %v303
          %v449 = vpop.permute.xlu0 %448
          %v450 = vsel %vm433, %v440, %v413
          %v451 = vsel %vm434, %v440, %v414
          %v452 = vsel %vm435, %v440, %v415
          %v453 = vsel %vm436, %v440, %v416
          %v454 = vsel %vm437, %v440, %v417
          %v455 = vsel %vm433, %v443, %v418
          %v456 = vsel %vm434, %v443, %v419
          %v457 = vsel %vm435, %v443, %v420
          %v458 = vsel %vm436, %v443, %v421
          %v459 = vsel %vm437, %v443, %v422
          %v460 = vsel %vm433, %v446, %v423
          %v461 = vsel %vm434, %v446, %v424
          %v462 = vsel %vm435, %v446, %v425
          %v463 = vsel %vm436, %v446, %v426
          %v464 = vsel %vm437, %v446, %v427
          %v465 = vsel %vm433, %v449, %v428
          %v466 = vsel %vm434, %v449, %v429
          %v467 = vsel %vm435, %v449, %v430
          %v468 = vsel %vm436, %v449, %v431
          %v469 = vsel %vm437, %v449, %v432
          %vm470 = vcmp.lt.s32.totalorder %v305, 240
          %vm471 = vcmp.lt.s32.totalorder %v306, 240
          %vm472 = vcmp.lt.s32.totalorder %v307, 240
          %vm473 = vcmp.lt.s32.totalorder %v308, 240
          %vm474 = vcmp.lt.s32.totalorder %v309, 240
          %475 = vset.pattern.permute.xlu0 2
          %476 = vperm.xlu0 %475, %v300
          %v477 = vpop.permute.xlu0 %476
          %478 = vset.pattern.permute.xlu0 2
          %479 = vperm.xlu0 %478, %v301
          %v480 = vpop.permute.xlu0 %479
          %481 = vset.pattern.permute.xlu0 2
          %482 = vperm.xlu0 %481, %v302
          %v483 = vpop.permute.xlu0 %482
          %484 = vset.pattern.permute.xlu0 2
          %485 = vperm.xlu0 %484, %v303
          %v486 = vpop.permute.xlu0 %485
          %v487 = vsel %vm470, %v477, %v450
          %v488 = vsel %vm471, %v477, %v451
          %v489 = vsel %vm472, %v477, %v452
          %v490 = vsel %vm473, %v477, %v453
          %v491 = vsel %vm474, %v477, %v454
          %v492 = vsel %vm470, %v480, %v455
          %v493 = vsel %vm471, %v480, %v456
          %v494 = vsel %vm472, %v480, %v457
          %v495 = vsel %vm473, %v480, %v458
          %v496 = vsel %vm474, %v480, %v459
          %v497 = vsel %vm470, %v483, %v460
          %v498 = vsel %vm471, %v483, %v461
          %v499 = vsel %vm472, %v483, %v462
          %v500 = vsel %vm473, %v483, %v463
          %v501 = vsel %vm474, %v483, %v464
          %v502 = vsel %vm470, %v486, %v465
          %v503 = vsel %vm471, %v486, %v466
          %v504 = vsel %vm472, %v486, %v467
          %v505 = vsel %vm473, %v486, %v468
          %v506 = vsel %vm474, %v486, %v469
          %vm507 = vcmp.lt.s32.totalorder %v305, 160
          %vm508 = vcmp.lt.s32.totalorder %v306, 160
          %vm509 = vcmp.lt.s32.totalorder %v307, 160
          %vm510 = vcmp.lt.s32.totalorder %v308, 160
          %vm511 = vcmp.lt.s32.totalorder %v309, 160
          %512 = vset.pattern.permute.xlu0 1
          %513 = vperm.xlu0 %512, %v300
          %v514 = vpop.permute.xlu0 %513
          %515 = vset.pattern.permute.xlu0 1
          %516 = vperm.xlu0 %515, %v301
          %v517 = vpop.permute.xlu0 %516
          %518 = vset.pattern.permute.xlu0 1
          %519 = vperm.xlu0 %518, %v302
          %v520 = vpop.permute.xlu0 %519
          %521 = vset.pattern.permute.xlu0 1
          %522 = vperm.xlu0 %521, %v303
          %v523 = vpop.permute.xlu0 %522
          %v524 = vsel %vm507, %v514, %v487
          %v525 = vsel %vm508, %v514, %v488
          %v526 = vsel %vm509, %v514, %v489
          %v527 = vsel %vm510, %v514, %v490
          %v528 = vsel %vm511, %v514, %v491
          %v529 = vsel %vm507, %v517, %v492
          %v530 = vsel %vm508, %v517, %v493
          %v531 = vsel %vm509, %v517, %v494
          %v532 = vsel %vm510, %v517, %v495
          %v533 = vsel %vm511, %v517, %v496
          %v534 = vsel %vm507, %v520, %v497
          %v535 = vsel %vm508, %v520, %v498
          %v536 = vsel %vm509, %v520, %v499
          %v537 = vsel %vm510, %v520, %v500
          %v538 = vsel %vm511, %v520, %v501
          %v539 = vsel %vm507, %v523, %v502
          %v540 = vsel %vm508, %v523, %v503
          %v541 = vsel %vm509, %v523, %v504
          %v542 = vsel %vm510, %v523, %v505
          %v543 = vsel %vm511, %v523, %v506
          %vm544 = vcmp.lt.s32.totalorder %v305, 80
          %vm545 = vcmp.lt.s32.totalorder %v306, 80
          %vm546 = vcmp.lt.s32.totalorder %v307, 80
          %vm547 = vcmp.lt.s32.totalorder %v308, 80
          %vm548 = vcmp.lt.s32.totalorder %v309, 80
          %549 = vset.pattern.permute.xlu0 0
          %550 = vperm.xlu0 %549, %v300
          %v551 = vpop.permute.xlu0 %550
          %552 = vset.pattern.permute.xlu0 0
          %553 = vperm.xlu0 %552, %v301
          %v554 = vpop.permute.xlu0 %553
          %555 = vset.pattern.permute.xlu0 0
          %556 = vperm.xlu0 %555, %v302
          %v557 = vpop.permute.xlu0 %556
          %558 = vset.pattern.permute.xlu0 0
          %559 = vperm.xlu0 %558, %v303
          %v560 = vpop.permute.xlu0 %559
          %v561 = vsel %vm544, %v551, %v524
          %v562 = vsel %vm545, %v551, %v525
          %v563 = vsel %vm546, %v551, %v526
          %v564 = vsel %vm547, %v551, %v527
          %v565 = vsel %vm548, %v551, %v528
          %v566 = vsel %vm544, %v554, %v529
          %v567 = vsel %vm545, %v554, %v530
          %v568 = vsel %vm546, %v554, %v531
          %v569 = vsel %vm547, %v554, %v532
          %v570 = vsel %vm548, %v554, %v533
          %v571 = vsel %vm544, %v557, %v534
          %v572 = vsel %vm545, %v557, %v535
          %v573 = vsel %vm546, %v557, %v536
          %v574 = vsel %vm547, %v557, %v537
          %v575 = vsel %vm548, %v557, %v538
          %v576 = vsel %vm544, %v560, %v539
          %v577 = vsel %vm545, %v560, %v540
          %v578 = vsel %vm546, %v560, %v541
          %v579 = vsel %vm547, %v560, %v542
          %v580 = vsel %vm548, %v560, %v543
          %vm581 = vcmp.eq.s32.totalorder %v305, %v561
          %vm582 = vcmp.eq.s32.totalorder %v306, %v562
          %vm583 = vcmp.eq.s32.totalorder %v307, %v563
          %vm584 = vcmp.eq.s32.totalorder %v308, %v564
          %vm585 = vcmp.eq.s32.totalorder %v309, %v565
          %vm586 = vcmp.eq.s32.totalorder %v305, %v566
          %vm587 = vcmp.eq.s32.totalorder %v306, %v567
          %vm588 = vcmp.eq.s32.totalorder %v307, %v568
          %vm589 = vcmp.eq.s32.totalorder %v308, %v569
          %vm590 = vcmp.eq.s32.totalorder %v309, %v570
          %vm591 = vcmp.eq.s32.totalorder %v305, %v571
          %vm592 = vcmp.eq.s32.totalorder %v306, %v572
          %vm593 = vcmp.eq.s32.totalorder %v307, %v573
          %vm594 = vcmp.eq.s32.totalorder %v308, %v574
          %vm595 = vcmp.eq.s32.totalorder %v309, %v575
          %vm596 = vcmp.eq.s32.totalorder %v305, %v576
          %vm597 = vcmp.eq.s32.totalorder %v306, %v577
          %vm598 = vcmp.eq.s32.totalorder %v307, %v578
          %vm599 = vcmp.eq.s32.totalorder %v308, %v579
          %vm600 = vcmp.eq.s32.totalorder %v309, %v580
          %vm601 = vcmp.ge.s32.totalorder %v561, 0
          %vm602 = vcmp.ge.s32.totalorder %v562, 0
          %vm603 = vcmp.ge.s32.totalorder %v563, 0
          %vm604 = vcmp.ge.s32.totalorder %v564, 0
          %vm605 = vcmp.ge.s32.totalorder %v565, 0
          %vm606 = vcmp.ge.s32.totalorder %v566, 0
          %vm607 = vcmp.ge.s32.totalorder %v567, 0
          %vm608 = vcmp.ge.s32.totalorder %v568, 0
          %vm609 = vcmp.ge.s32.totalorder %v569, 0
          %vm610 = vcmp.ge.s32.totalorder %v570, 0
          %vm611 = vcmp.ge.s32.totalorder %v571, 0
          %vm612 = vcmp.ge.s32.totalorder %v572, 0
          %vm613 = vcmp.ge.s32.totalorder %v573, 0
          %vm614 = vcmp.ge.s32.totalorder %v574, 0
          %vm615 = vcmp.ge.s32.totalorder %v575, 0
          %vm616 = vcmp.ge.s32.totalorder %v576, 0
          %vm617 = vcmp.ge.s32.totalorder %v577, 0
          %vm618 = vcmp.ge.s32.totalorder %v578, 0
          %vm619 = vcmp.ge.s32.totalorder %v579, 0
          %vm620 = vcmp.ge.s32.totalorder %v580, 0
          %v621 = vxor.u32 %v280, 2147483648
          %v622 = vxor.u32 %v281, 2147483648
          %v623 = vxor.u32 %v282, 2147483648
          %v624 = vxor.u32 %v283, 2147483648
          %v625 = vxor.u32 %v284, 2147483648
          %v626 = vxor.u32 %v285, 2147483648
          %v627 = vxor.u32 %v286, 2147483648
          %v628 = vxor.u32 %v287, 2147483648
          %v629 = vxor.u32 %v288, 2147483648
          %v630 = vxor.u32 %v289, 2147483648
          %v631 = vxor.u32 %v290, 2147483648
          %v632 = vxor.u32 %v291, 2147483648
          %v633 = vxor.u32 %v292, 2147483648
          %v634 = vxor.u32 %v293, 2147483648
          %v635 = vxor.u32 %v294, 2147483648
          %v636 = vxor.u32 %v295, 2147483648
          %v637 = vxor.u32 %v296, 2147483648
          %v638 = vxor.u32 %v297, 2147483648
          %v639 = vxor.u32 %v298, 2147483648
          %v640 = vxor.u32 %v299, 2147483648
          %v641 = vmul.f32 %v621, 1.442695
          %v642 = vpow.pop %v641
          %v643 = vmul.f32 %v622, 1.442695
          %v644 = vpow.pop %v643
          %v645 = vmul.f32 %v623, 1.442695
          %v646 = vpow.pop %v645
          %v647 = vmul.f32 %v624, 1.442695
          %v648 = vpow.pop %v647
          %v649 = vmul.f32 %v625, 1.442695
          %v650 = vpow.pop %v649
          %v651 = vmul.f32 %v626, 1.442695
          %v652 = vpow.pop %v651
          %v653 = vmul.f32 %v627, 1.442695
          %v654 = vpow.pop %v653
          %v655 = vmul.f32 %v628, 1.442695
          %v656 = vpow.pop %v655
          %v657 = vmul.f32 %v629, 1.442695
          %v658 = vpow.pop %v657
          %v659 = vmul.f32 %v630, 1.442695
          %v660 = vpow.pop %v659
          %v661 = vmul.f32 %v631, 1.442695
          %v662 = vpow.pop %v661
          %v663 = vmul.f32 %v632, 1.442695
          %v664 = vpow.pop %v663
          %v665 = vmul.f32 %v633, 1.442695
          %v666 = vpow.pop %v665
          %v667 = vmul.f32 %v634, 1.442695
          %v668 = vpow.pop %v667
          %v669 = vmul.f32 %v635, 1.442695
          %v670 = vpow.pop %v669
          %v671 = vmul.f32 %v636, 1.442695
          %v672 = vpow.pop %v671
          %v673 = vmul.f32 %v637, 1.442695
          %v674 = vpow.pop %v673
          %v675 = vmul.f32 %v638, 1.442695
          %v676 = vpow.pop %v675
          %v677 = vmul.f32 %v639, 1.442695
          %v678 = vpow.pop %v677
          %v679 = vmul.f32 %v640, 1.442695
          %v680 = vpow.pop %v679
          %v681 = vadd.f32 %v642, 1.0
          %v682 = vadd.f32 %v644, 1.0
          %v683 = vadd.f32 %v646, 1.0
          %v684 = vadd.f32 %v648, 1.0
          %v685 = vadd.f32 %v650, 1.0
          %v686 = vadd.f32 %v652, 1.0
          %v687 = vadd.f32 %v654, 1.0
          %v688 = vadd.f32 %v656, 1.0
          %v689 = vadd.f32 %v658, 1.0
          %v690 = vadd.f32 %v660, 1.0
          %v691 = vadd.f32 %v662, 1.0
          %v692 = vadd.f32 %v664, 1.0
          %v693 = vadd.f32 %v666, 1.0
          %v694 = vadd.f32 %v668, 1.0
          %v695 = vadd.f32 %v670, 1.0
          %v696 = vadd.f32 %v672, 1.0
          %v697 = vadd.f32 %v674, 1.0
          %v698 = vadd.f32 %v676, 1.0
          %v699 = vadd.f32 %v678, 1.0
          %v700 = vadd.f32 %v680, 1.0
          %v701 = vrcp.pop %v681
          %v702 = vmul.f32 1.0, %v701
          %v703 = vrcp.pop %v682
          %v704 = vmul.f32 1.0, %v703
          %v705 = vrcp.pop %v683
          %v706 = vmul.f32 1.0, %v705
          %v707 = vrcp.pop %v684
          %v708 = vmul.f32 1.0, %v707
          %v709 = vrcp.pop %v685
          %v710 = vmul.f32 1.0, %v709
          %v711 = vrcp.pop %v686
          %v712 = vmul.f32 1.0, %v711
          %v713 = vrcp.pop %v687
          %v714 = vmul.f32 1.0, %v713
          %v715 = vrcp.pop %v688
          %v716 = vmul.f32 1.0, %v715
          %v717 = vrcp.pop %v689
          %v718 = vmul.f32 1.0, %v717
          %v719 = vrcp.pop %v690
          %v720 = vmul.f32 1.0, %v719
          %v721 = vrcp.pop %v691
          %v722 = vmul.f32 1.0, %v721
          %v723 = vrcp.pop %v692
          %v724 = vmul.f32 1.0, %v723
          %v725 = vrcp.pop %v693
          %v726 = vmul.f32 1.0, %v725
          %v727 = vrcp.pop %v694
          %v728 = vmul.f32 1.0, %v727
          %v729 = vrcp.pop %v695
          %v730 = vmul.f32 1.0, %v729
          %v731 = vrcp.pop %v696
          %v732 = vmul.f32 1.0, %v731
          %v733 = vrcp.pop %v697
          %v734 = vmul.f32 1.0, %v733
          %v735 = vrcp.pop %v698
          %v736 = vmul.f32 1.0, %v735
          %v737 = vrcp.pop %v699
          %v738 = vmul.f32 1.0, %v737
          %v739 = vrcp.pop %v700
          %v740 = vmul.f32 1.0, %v739
          %v741 = vmax.f32 %v702, 1e-06
          %v742 = vmax.f32 %v704, 1e-06
          %v743 = vmax.f32 %v706, 1e-06
          %v744 = vmax.f32 %v708, 1e-06
          %v745 = vmax.f32 %v710, 1e-06
          %v746 = vmax.f32 %v712, 1e-06
          %v747 = vmax.f32 %v714, 1e-06
          %v748 = vmax.f32 %v716, 1e-06
          %v749 = vmax.f32 %v718, 1e-06
          %v750 = vmax.f32 %v720, 1e-06
          %v751 = vmax.f32 %v722, 1e-06
          %v752 = vmax.f32 %v724, 1e-06
          %v753 = vmax.f32 %v726, 1e-06
          %v754 = vmax.f32 %v728, 1e-06
          %v755 = vmax.f32 %v730, 1e-06
          %v756 = vmax.f32 %v732, 1e-06
          %v757 = vmax.f32 %v734, 1e-06
          %v758 = vmax.f32 %v736, 1e-06
          %v759 = vmax.f32 %v738, 1e-06
          %v760 = vmax.f32 %v740, 1e-06
          %v761 = vmin.f32 %v741, 0.999999
          %v762 = vmin.f32 %v742, 0.999999
          %v763 = vmin.f32 %v743, 0.999999
          %v764 = vmin.f32 %v744, 0.999999
          %v765 = vmin.f32 %v745, 0.999999
          %v766 = vmin.f32 %v746, 0.999999
          %v767 = vmin.f32 %v747, 0.999999
          %v768 = vmin.f32 %v748, 0.999999
          %v769 = vmin.f32 %v749, 0.999999
          %v770 = vmin.f32 %v750, 0.999999
          %v771 = vmin.f32 %v751, 0.999999
          %v772 = vmin.f32 %v752, 0.999999
          %v773 = vmin.f32 %v753, 0.999999
          %v774 = vmin.f32 %v754, 0.999999
          %v775 = vmin.f32 %v755, 0.999999
          %v776 = vmin.f32 %v756, 0.999999
          %v777 = vmin.f32 %v757, 0.999999
          %v778 = vmin.f32 %v758, 0.999999
          %v779 = vmin.f32 %v759, 0.999999
          %v780 = vmin.f32 %v760, 0.999999
          %v781 = vlog2.pop %v761
          %v782 = vmul.f32 %v781, 0.6931472
          %v783 = vlog2.pop %v762
          %v784 = vmul.f32 %v783, 0.6931472
          %v785 = vlog2.pop %v763
          %v786 = vmul.f32 %v785, 0.6931472
          %v787 = vlog2.pop %v764
          %v788 = vmul.f32 %v787, 0.6931472
          %v789 = vlog2.pop %v765
          %v790 = vmul.f32 %v789, 0.6931472
          %v791 = vlog2.pop %v766
          %v792 = vmul.f32 %v791, 0.6931472
          %v793 = vlog2.pop %v767
          %v794 = vmul.f32 %v793, 0.6931472
          %v795 = vlog2.pop %v768
          %v796 = vmul.f32 %v795, 0.6931472
          %v797 = vlog2.pop %v769
          %v798 = vmul.f32 %v797, 0.6931472
          %v799 = vlog2.pop %v770
          %v800 = vmul.f32 %v799, 0.6931472
          %v801 = vlog2.pop %v771
          %v802 = vmul.f32 %v801, 0.6931472
          %v803 = vlog2.pop %v772
          %v804 = vmul.f32 %v803, 0.6931472
          %v805 = vlog2.pop %v773
          %v806 = vmul.f32 %v805, 0.6931472
          %v807 = vlog2.pop %v774
          %v808 = vmul.f32 %v807, 0.6931472
          %v809 = vlog2.pop %v775
          %v810 = vmul.f32 %v809, 0.6931472
          %v811 = vlog2.pop %v776
          %v812 = vmul.f32 %v811, 0.6931472
          %v813 = vlog2.pop %v777
          %v814 = vmul.f32 %v813, 0.6931472
          %v815 = vlog2.pop %v778
          %v816 = vmul.f32 %v815, 0.6931472
          %v817 = vlog2.pop %v779
          %v818 = vmul.f32 %v817, 0.6931472
          %v819 = vlog2.pop %v780
          %v820 = vmul.f32 %v819, 0.6931472
          %v821 = vsub.f32 %v782, %v280
          %v822 = vsub.f32 %v784, %v281
          %v823 = vsub.f32 %v786, %v282
          %v824 = vsub.f32 %v788, %v283
          %v825 = vsub.f32 %v790, %v284
          %v826 = vsub.f32 %v792, %v285
          %v827 = vsub.f32 %v794, %v286
          %v828 = vsub.f32 %v796, %v287
          %v829 = vsub.f32 %v798, %v288
          %v830 = vsub.f32 %v800, %v289
          %v831 = vsub.f32 %v802, %v290
          %v832 = vsub.f32 %v804, %v291
          %v833 = vsub.f32 %v806, %v292
          %v834 = vsub.f32 %v808, %v293
          %v835 = vsub.f32 %v810, %v294
          %v836 = vsub.f32 %v812, %v295
          %v837 = vsub.f32 %v814, %v296
          %v838 = vsub.f32 %v816, %v297
          %v839 = vsub.f32 %v818, %v298
          %v840 = vsub.f32 %v820, %v299
          %v841 = vmax.f32 %v821, -13.815511
          %v842 = vmax.f32 %v822, -13.815511
          %v843 = vmax.f32 %v823, -13.815511
          %v844 = vmax.f32 %v824, -13.815511
          %v845 = vmax.f32 %v825, -13.815511
          %v846 = vmax.f32 %v826, -13.815511
          %v847 = vmax.f32 %v827, -13.815511
          %v848 = vmax.f32 %v828, -13.815511
          %v849 = vmax.f32 %v829, -13.815511
          %v850 = vmax.f32 %v830, -13.815511
          %v851 = vmax.f32 %v831, -13.815511
          %v852 = vmax.f32 %v832, -13.815511
          %v853 = vmax.f32 %v833, -13.815511
          %v854 = vmax.f32 %v834, -13.815511
          %v855 = vmax.f32 %v835, -13.815511
          %v856 = vmax.f32 %v836, -13.815511
          %v857 = vmax.f32 %v837, -13.815511
          %v858 = vmax.f32 %v838, -13.815511
          %v859 = vmax.f32 %v839, -13.815511
          %v860 = vmax.f32 %v840, -13.815511
          %v861 = vmin.f32 %v841, -1.0000005e-06
          %v862 = vmin.f32 %v842, -1.0000005e-06
          %v863 = vmin.f32 %v843, -1.0000005e-06
          %v864 = vmin.f32 %v844, -1.0000005e-06
          %v865 = vmin.f32 %v845, -1.0000005e-06
          %v866 = vmin.f32 %v846, -1.0000005e-06
          %v867 = vmin.f32 %v847, -1.0000005e-06
          %v868 = vmin.f32 %v848, -1.0000005e-06
          %v869 = vmin.f32 %v849, -1.0000005e-06
          %v870 = vmin.f32 %v850, -1.0000005e-06
          %v871 = vmin.f32 %v851, -1.0000005e-06
          %v872 = vmin.f32 %v852, -1.0000005e-06
          %v873 = vmin.f32 %v853, -1.0000005e-06
          %v874 = vmin.f32 %v854, -1.0000005e-06
          %v875 = vmin.f32 %v855, -1.0000005e-06
          %v876 = vmin.f32 %v856, -1.0000005e-06
          %v877 = vmin.f32 %v857, -1.0000005e-06
          %v878 = vmin.f32 %v858, -1.0000005e-06
          %v879 = vmin.f32 %v859, -1.0000005e-06
          %v880 = vmin.f32 %v860, -1.0000005e-06
          %v881 = vsub.f32 1.0, %v761
          %v882 = vsub.f32 1.0, %v762
          %v883 = vsub.f32 1.0, %v763
          %v884 = vsub.f32 1.0, %v764
          %v885 = vsub.f32 1.0, %v765
          %v886 = vsub.f32 1.0, %v766
          %v887 = vsub.f32 1.0, %v767
          %v888 = vsub.f32 1.0, %v768
          %v889 = vsub.f32 1.0, %v769
          %v890 = vsub.f32 1.0, %v770
          %v891 = vsub.f32 1.0, %v771
          %v892 = vsub.f32 1.0, %v772
          %v893 = vsub.f32 1.0, %v773
          %v894 = vsub.f32 1.0, %v774
          %v895 = vsub.f32 1.0, %v775
          %v896 = vsub.f32 1.0, %v776
          %v897 = vsub.f32 1.0, %v777
          %v898 = vsub.f32 1.0, %v778
          %v899 = vsub.f32 1.0, %v779
          %v900 = vsub.f32 1.0, %v780
          %v901 = vmul.f32 %v881, %v881
          %v902 = vmul.f32 %v882, %v882
          %v903 = vmul.f32 %v883, %v883
          %v904 = vmul.f32 %v884, %v884
          %v905 = vmul.f32 %v885, %v885
          %v906 = vmul.f32 %v886, %v886
          %v907 = vmul.f32 %v887, %v887
          %v908 = vmul.f32 %v888, %v888
          %v909 = vmul.f32 %v889, %v889
          %v910 = vmul.f32 %v890, %v890
          %v911 = vmul.f32 %v891, %v891
          %v912 = vmul.f32 %v892, %v892
          %v913 = vmul.f32 %v893, %v893
          %v914 = vmul.f32 %v894, %v894
          %v915 = vmul.f32 %v895, %v895
          %v916 = vmul.f32 %v896, %v896
          %v917 = vmul.f32 %v897, %v897
          %v918 = vmul.f32 %v898, %v898
          %v919 = vmul.f32 %v899, %v899
          %v920 = vmul.f32 %v900, %v900
          %v921 = vmul.f32 %v761, %v761
          %v922 = vmul.f32 %v762, %v762
          %v923 = vmul.f32 %v763, %v763
          %v924 = vmul.f32 %v764, %v764
          %v925 = vmul.f32 %v765, %v765
          %v926 = vmul.f32 %v766, %v766
          %v927 = vmul.f32 %v767, %v767
          %v928 = vmul.f32 %v768, %v768
          %v929 = vmul.f32 %v769, %v769
          %v930 = vmul.f32 %v770, %v770
          %v931 = vmul.f32 %v771, %v771
          %v932 = vmul.f32 %v772, %v772
          %v933 = vmul.f32 %v773, %v773
          %v934 = vmul.f32 %v774, %v774
          %v935 = vmul.f32 %v775, %v775
          %v936 = vmul.f32 %v776, %v776
          %v937 = vmul.f32 %v777, %v777
          %v938 = vmul.f32 %v778, %v778
          %v939 = vmul.f32 %v779, %v779
          %v940 = vmul.f32 %v780, %v780
          %v941 = vmul.f32 %v901, -0.25
          %v942 = vmul.f32 %v902, -0.25
          %v943 = vmul.f32 %v903, -0.25
          %v944 = vmul.f32 %v904, -0.25
          %v945 = vmul.f32 %v905, -0.25
          %v946 = vmul.f32 %v906, -0.25
          %v947 = vmul.f32 %v907, -0.25
          %v948 = vmul.f32 %v908, -0.25
          %v949 = vmul.f32 %v909, -0.25
          %v950 = vmul.f32 %v910, -0.25
          %v951 = vmul.f32 %v911, -0.25
          %v952 = vmul.f32 %v912, -0.25
          %v953 = vmul.f32 %v913, -0.25
          %v954 = vmul.f32 %v914, -0.25
          %v955 = vmul.f32 %v915, -0.25
          %v956 = vmul.f32 %v916, -0.25
          %v957 = vmul.f32 %v917, -0.25
          %v958 = vmul.f32 %v918, -0.25
          %v959 = vmul.f32 %v919, -0.25
          %v960 = vmul.f32 %v920, -0.25
          %v961 = vmul.f32 %v941, %v782
          %v962 = vmul.f32 %v942, %v784
          %v963 = vmul.f32 %v943, %v786
          %v964 = vmul.f32 %v944, %v788
          %v965 = vmul.f32 %v945, %v790
          %v966 = vmul.f32 %v946, %v792
          %v967 = vmul.f32 %v947, %v794
          %v968 = vmul.f32 %v948, %v796
          %v969 = vmul.f32 %v949, %v798
          %v970 = vmul.f32 %v950, %v800
          %v971 = vmul.f32 %v951, %v802
          %v972 = vmul.f32 %v952, %v804
          %v973 = vmul.f32 %v953, %v806
          %v974 = vmul.f32 %v954, %v808
          %v975 = vmul.f32 %v955, %v810
          %v976 = vmul.f32 %v956, %v812
          %v977 = vmul.f32 %v957, %v814
          %v978 = vmul.f32 %v958, %v816
          %v979 = vmul.f32 %v959, %v818
          %v980 = vmul.f32 %v960, %v820
          %v981 = vmul.f32 %v921, -0.75
          %v982 = vmul.f32 %v922, -0.75
          %v983 = vmul.f32 %v923, -0.75
          %v984 = vmul.f32 %v924, -0.75
          %v985 = vmul.f32 %v925, -0.75
          %v986 = vmul.f32 %v926, -0.75
          %v987 = vmul.f32 %v927, -0.75
          %v988 = vmul.f32 %v928, -0.75
          %v989 = vmul.f32 %v929, -0.75
          %v990 = vmul.f32 %v930, -0.75
          %v991 = vmul.f32 %v931, -0.75
          %v992 = vmul.f32 %v932, -0.75
          %v993 = vmul.f32 %v933, -0.75
          %v994 = vmul.f32 %v934, -0.75
          %v995 = vmul.f32 %v935, -0.75
          %v996 = vmul.f32 %v936, -0.75
          %v997 = vmul.f32 %v937, -0.75
          %v998 = vmul.f32 %v938, -0.75
          %v999 = vmul.f32 %v939, -0.75
          %v1000 = vmul.f32 %v940, -0.75
          %v1001 = vmul.f32 %v981, %v861
          %v1002 = vmul.f32 %v982, %v862
          %v1003 = vmul.f32 %v983, %v863
          %v1004 = vmul.f32 %v984, %v864
          %v1005 = vmul.f32 %v985, %v865
          %v1006 = vmul.f32 %v986, %v866
          %v1007 = vmul.f32 %v987, %v867
          %v1008 = vmul.f32 %v988, %v868
          %v1009 = vmul.f32 %v989, %v869
          %v1010 = vmul.f32 %v990, %v870
          %v1011 = vmul.f32 %v991, %v871
          %v1012 = vmul.f32 %v992, %v872
          %v1013 = vmul.f32 %v993, %v873
          %v1014 = vmul.f32 %v994, %v874
          %v1015 = vmul.f32 %v995, %v875
          %v1016 = vmul.f32 %v996, %v876
          %v1017 = vmul.f32 %v997, %v877
          %v1018 = vmul.f32 %v998, %v878
          %v1019 = vmul.f32 %v999, %v879
          %v1020 = vmul.f32 %v1000, %v880
          %v1021 = vsel %vm601, %v1001, 0.0
          %v1022 = vsel %vm602, %v1002, 0.0
          %v1023 = vsel %vm603, %v1003, 0.0
          %v1024 = vsel %vm604, %v1004, 0.0
          %v1025 = vsel %vm605, %v1005, 0.0
          %v1026 = vsel %vm606, %v1006, 0.0
          %v1027 = vsel %vm607, %v1007, 0.0
          %v1028 = vsel %vm608, %v1008, 0.0
          %v1029 = vsel %vm609, %v1009, 0.0
          %v1030 = vsel %vm610, %v1010, 0.0
          %v1031 = vsel %vm611, %v1011, 0.0
          %v1032 = vsel %vm612, %v1012, 0.0
          %v1033 = vsel %vm613, %v1013, 0.0
          %v1034 = vsel %vm614, %v1014, 0.0
          %v1035 = vsel %vm615, %v1015, 0.0
          %v1036 = vsel %vm616, %v1016, 0.0
          %v1037 = vsel %vm617, %v1017, 0.0
          %v1038 = vsel %vm618, %v1018, 0.0
          %v1039 = vsel %vm619, %v1019, 0.0
          %v1040 = vsel %vm620, %v1020, 0.0
          %v1041 = vsel %vm581, %v961, %v1021
          %v1042 = vsel %vm582, %v962, %v1022
          %v1043 = vsel %vm583, %v963, %v1023
          %v1044 = vsel %vm584, %v964, %v1024
          %v1045 = vsel %vm585, %v965, %v1025
          %v1046 = vsel %vm586, %v966, %v1026
          %v1047 = vsel %vm587, %v967, %v1027
          %v1048 = vsel %vm588, %v968, %v1028
          %v1049 = vsel %vm589, %v969, %v1029
          %v1050 = vsel %vm590, %v970, %v1030
          %v1051 = vsel %vm591, %v971, %v1031
          %v1052 = vsel %vm592, %v972, %v1032
          %v1053 = vsel %vm593, %v973, %v1033
          %v1054 = vsel %vm594, %v974, %v1034
          %v1055 = vsel %vm595, %v975, %v1035
          %v1056 = vsel %vm596, %v976, %v1036
          %v1057 = vsel %vm597, %v977, %v1037
          %v1058 = vsel %vm598, %v978, %v1038
          %v1059 = vsel %vm599, %v979, %v1039
          %v1060 = vsel %vm600, %v980, %v1040
          %v1061 = vadd.f32 %v260, %v1041
          %v1062 = vadd.f32 %v261, %v1042
          %v1063 = vadd.f32 %v262, %v1043
          %v1064 = vadd.f32 %v263, %v1044
          %v1065 = vadd.f32 %v264, %v1045
          %v1066 = vadd.f32 %v265, %v1046
          %v1067 = vadd.f32 %v266, %v1047
          %v1068 = vadd.f32 %v267, %v1048
          %v1069 = vadd.f32 %v268, %v1049
          %v1070 = vadd.f32 %v269, %v1050
          %v1071 = vadd.f32 %v270, %v1051
          %v1072 = vadd.f32 %v271, %v1052
          %v1073 = vadd.f32 %v272, %v1053
          %v1074 = vadd.f32 %v273, %v1054
          %v1075 = vadd.f32 %v274, %v1055
          %v1076 = vadd.f32 %v275, %v1056
          %v1077 = vadd.f32 %v276, %v1057
          %v1078 = vadd.f32 %v277, %v1058
          %v1079 = vadd.f32 %v278, %v1059
          %v1080 = vadd.f32 %v279, %v1060
          %1081 = vst [vmem:[#allocation2] sm:$0xff] %v1061
          %1082 = vst [vmem:[#allocation2 + $0x8] sm:$0xff] %v1062
          %1083 = vst [vmem:[#allocation2 + $0x10] sm:$0xff] %v1063
          %1084 = vst [vmem:[#allocation2 + $0x18] sm:$0xff] %v1064
          %1085 = vst [vmem:[#allocation2 + $0x20] sm:$0xff] %v1065
          %1086 = vst [vmem:[#allocation2 + $0x28] sm:$0xff] %v1066
          %1087 = vst [vmem:[#allocation2 + $0x30] sm:$0xff] %v1067
          %1088 = vst [vmem:[#allocation2 + $0x38] sm:$0xff] %v1068
          %1089 = vst [vmem:[#allocation2 + $0x40] sm:$0xff] %v1069
          %1090 = vst [vmem:[#allocation2 + $0x48] sm:$0xff] %v1070
          %1091 = vst [vmem:[#allocation2 + $0x50] sm:$0xff] %v1071
          %1092 = vst [vmem:[#allocation2 + $0x58] sm:$0xff] %v1072
          %1093 = vst [vmem:[#allocation2 + $0x60] sm:$0xff] %v1073
          %1094 = vst [vmem:[#allocation2 + $0x68] sm:$0xff] %v1074
          %1095 = vst [vmem:[#allocation2 + $0x70] sm:$0xff] %v1075
          %1096 = vst [vmem:[#allocation2 + $0x78] sm:$0x1] %v1076
          %1097 = vst [vmem:[#allocation2 + $0x80] sm:$0x1] %v1077
          %1098 = vst [vmem:[#allocation2 + $0x88] sm:$0x1] %v1078
          %1099 = vst [vmem:[#allocation2 + $0x90] sm:$0x1] %v1079
          %1100 = vst [vmem:[#allocation2 + $0x98] sm:$0x1] %v1080
        $region40: #{tpu_custom_call.1} parent=27 // pred_fallthru
          _
        %p1101 = scmp.gt.s32.totalorder %s255, 25
        // Predicated region
        $region41: #{tpu_custom_call.1} parent=27 // pred_check
          %p1102 = pneg %p1101
        $region42: #{tpu_custom_call.1} parent=27 // pred_check_branch
          %1104 = sbr.rel (%p1102) target = $region44
        $region43: #{tpu_custom_call.1} parent=27 // pred_region
          %s1105 = smul.u32 %s253, 25
          %v1106 = vlaneseq
          %v1107 = vshrl.u32 %v1106, 7
          %v1108 = vadd.s32 %v1107, 8
          %v1109 = vadd.s32 %v1107, 16
          %v1110 = vadd.s32 %v1107, 24
          %v1111 = vstv %s1105
          %v1112 = vadd.s32 %v1111, %v1107
          %v1113 = vadd.s32 %v1111, %v1108
          %v1114 = vadd.s32 %v1111, %v1109
          %v1115 = vadd.s32 %v1111, %v1110
          %vm1116 = vcmp.lt.s32.totalorder %v1112, 25
          %vm1117 = vcmp.lt.s32.totalorder %v1113, 25
          %vm1118 = vcmp.lt.s32.totalorder %v1114, 25
          %vm1119 = vcmp.lt.s32.totalorder %v1115, 25
          %v1120 = vld [vmem:[%s183] sm:$0xff]
          %v1121 = vld [vmem:[%s183 + $0x8] sm:$0xff]
          %v1122 = vld [vmem:[%s183 + $0x10] sm:$0xff]
          %v1123 = vld [vmem:[%s183 + $0x18] sm:$0xff]
          %v1124 = vld [vmem:[%s183 + $0x20] sm:$0xff]
          %v1125 = vld [vmem:[%s183 + $0x28] sm:$0xff]
          %v1126 = vld [vmem:[%s183 + $0x30] sm:$0xff]
          %v1127 = vld [vmem:[%s183 + $0x38] sm:$0xff]
          %v1128 = vld [vmem:[%s183 + $0x40] sm:$0xff]
          %v1129 = vld [vmem:[%s183 + $0x48] sm:$0xff]
          %v1130 = vld [vmem:[%s183 + $0x50] sm:$0xff]
          %v1131 = vld [vmem:[%s183 + $0x58] sm:$0xff]
          %v1132 = vld [vmem:[%s183 + $0x60] sm:$0xff]
          %v1133 = vld [vmem:[%s183 + $0x68] sm:$0xff]
          %v1134 = vld [vmem:[%s183 + $0x70] sm:$0xff]
          %v1135 = vld [vmem:[%s183 + $0x78] sm:$0x1]
          %v1136 = vld [vmem:[%s183 + $0x80] sm:$0x1]
          %v1137 = vld [vmem:[%s183 + $0x88] sm:$0x1]
          %v1138 = vld [vmem:[%s183 + $0x90] sm:$0x1]
          %v1139 = vld [vmem:[%s183 + $0x98] sm:$0x1]
          %v1140 = vsel %vm1116, 1, 0
          %v1141 = vsel %vm1117, 1, 0
          %v1142 = vsel %vm1118, 1, 0
          %v1143 = vsel %vm1119, 1, 0
          %vm1144 = vcmp.eq.s32.totalorder %v1140, 1
          %vm1145 = vcmp.eq.s32.totalorder %v1141, 1
          %vm1146 = vcmp.eq.s32.totalorder %v1142, 1
          %vm1147 = vcmp.eq.s32.totalorder %v1143, 1
          %v1148 = vsel %vm1144, %v1120, 0.0
          %v1149 = vsel %vm1144, %v1121, 0.0
          %v1150 = vsel %vm1144, %v1122, 0.0
          %v1151 = vsel %vm1144, %v1123, 0.0
          %v1152 = vsel %vm1144, %v1124, 0.0
          %v1153 = vsel %vm1145, %v1125, 0.0
          %v1154 = vsel %vm1145, %v1126, 0.0
          %v1155 = vsel %vm1145, %v1127, 0.0
          %v1156 = vsel %vm1145, %v1128, 0.0
          %v1157 = vsel %vm1145, %v1129, 0.0
          %v1158 = vsel %vm1146, %v1130, 0.0
          %v1159 = vsel %vm1146, %v1131, 0.0
          %v1160 = vsel %vm1146, %v1132, 0.0
          %v1161 = vsel %vm1146, %v1133, 0.0
          %v1162 = vsel %vm1146, %v1134, 0.0
          %v1163 = vsel %vm1147, %v1135, 0.0
          %v1164 = vsel %vm1147, %v1136, 0.0
          %v1165 = vsel %vm1147, %v1137, 0.0
          %v1166 = vsel %vm1147, %v1138, 0.0
          %v1167 = vsel %vm1147, %v1139, 0.0
          %v1168 = vld [vmem:[%s217] sm:$0xff]
          %v1169 = vld [vmem:[%s217 + $0x8] sm:$0xff]
          %v1170 = vld [vmem:[%s217 + $0x10] sm:$0xff]
          %v1171 = vld [vmem:[%s217 + $0x18] sm:$0x1]
          %v1172 = vsel %vm1144, %v1168, 4294967295
          %v1173 = vsel %vm1145, %v1169, 4294967295
          %v1174 = vsel %vm1146, %v1170, 4294967295
          %v1175 = vsel %vm1147, %v1171, 4294967295
          %v1176 = vld [vmem:[#allocation2] sm:$0xff]
          %v1177 = vld [vmem:[#allocation2 + $0x8] sm:$0xff]
          %v1178 = vld [vmem:[#allocation2 + $0x10] sm:$0xff]
          %v1179 = vld [vmem:[#allocation2 + $0x18] sm:$0xff]
          %v1180 = vld [vmem:[#allocation2 + $0x20] sm:$0xff]
          %v1181 = vld [vmem:[#allocation2 + $0x28] sm:$0xff]
          %v1182 = vld [vmem:[#allocation2 + $0x30] sm:$0xff]
          %v1183 = vld [vmem:[#allocation2 + $0x38] sm:$0xff]
          %v1184 = vld [vmem:[#allocation2 + $0x40] sm:$0xff]
          %v1185 = vld [vmem:[#allocation2 + $0x48] sm:$0xff]
          %v1186 = vld [vmem:[#allocation2 + $0x50] sm:$0xff]
          %v1187 = vld [vmem:[#allocation2 + $0x58] sm:$0xff]
          %v1188 = vld [vmem:[#allocation2 + $0x60] sm:$0xff]
          %v1189 = vld [vmem:[#allocation2 + $0x68] sm:$0xff]
          %v1190 = vld [vmem:[#allocation2 + $0x70] sm:$0xff]
          %v1191 = vld [vmem:[#allocation2 + $0x78] sm:$0x1]
          %v1192 = vld [vmem:[#allocation2 + $0x80] sm:$0x1]
          %v1193 = vld [vmem:[#allocation2 + $0x88] sm:$0x1]
          %v1194 = vld [vmem:[#allocation2 + $0x90] sm:$0x1]
          %v1195 = vld [vmem:[#allocation2 + $0x98] sm:$0x1]
          %v1196 = vlaneseq
          %v1197 = vand.u32 %v1196, 127
          %v1198 = vadd.s32 %v1197, 128
          %v1199 = vadd.s32 %v1197, 256
          %v1200 = vadd.s32 %v1197, 384
          %v1201 = vadd.s32 %v1197, 512
          %vm1202 = vcmp.lt.s32.totalorder %v1197, 560
          %vm1203 = vcmp.lt.s32.totalorder %v1198, 560
          %vm1204 = vcmp.lt.s32.totalorder %v1199, 560
          %vm1205 = vcmp.lt.s32.totalorder %v1200, 560
          %vm1206 = vcmp.lt.s32.totalorder %v1201, 560
          %1207 = vset.pattern.permute.xlu0 6
          %1208 = vperm.xlu0 %1207, %v1172
          %v1209 = vpop.permute.xlu0 %1208
          %1210 = vset.pattern.permute.xlu0 6
          %1211 = vperm.xlu0 %1210, %v1173
          %v1212 = vpop.permute.xlu0 %1211
          %1213 = vset.pattern.permute.xlu0 6
          %1214 = vperm.xlu0 %1213, %v1174
          %v1215 = vpop.permute.xlu0 %1214
          %1216 = vset.pattern.permute.xlu0 6
          %1217 = vperm.xlu0 %1216, %v1175
          %v1218 = vpop.permute.xlu0 %1217
          %1219 = vset.pattern.permute.xlu0 7
          %1220 = vperm.xlu0 %1219, %v1172
          %v1221 = vpop.permute.xlu0 %1220
          %1222 = vset.pattern.permute.xlu0 7
          %1223 = vperm.xlu0 %1222, %v1173
          %v1224 = vpop.permute.xlu0 %1223
          %1225 = vset.pattern.permute.xlu0 7
          %1226 = vperm.xlu0 %1225, %v1174
          %v1227 = vpop.permute.xlu0 %1226
          %1228 = vset.pattern.permute.xlu0 7
          %1229 = vperm.xlu0 %1228, %v1175
          %v1230 = vpop.permute.xlu0 %1229
          %v1231 = vsel %vm1202, %v1209, %v1221
          %v1232 = vsel %vm1203, %v1209, %v1221
          %v1233 = vsel %vm1204, %v1209, %v1221
          %v1234 = vsel %vm1205, %v1209, %v1221
          %v1235 = vsel %vm1206, %v1209, %v1221
          %v1236 = vsel %vm1202, %v1212, %v1224
          %v1237 = vsel %vm1203, %v1212, %v1224
          %v1238 = vsel %vm1204, %v1212, %v1224
          %v1239 = vsel %vm1205, %v1212, %v1224
          %v1240 = vsel %vm1206, %v1212, %v1224
          %v1241 = vsel %vm1202, %v1215, %v1227
          %v1242 = vsel %vm1203, %v1215, %v1227
          %v1243 = vsel %vm1204, %v1215, %v1227
          %v1244 = vsel %vm1205, %v1215, %v1227
          %v1245 = vsel %vm1206, %v1215, %v1227
          %v1246 = vsel %vm1202, %v1218, %v1230
          %v1247 = vsel %vm1203, %v1218, %v1230
          %v1248 = vsel %vm1204, %v1218, %v1230
          %v1249 = vsel %vm1205, %v1218, %v1230
          %v1250 = vsel %vm1206, %v1218, %v1230
          %vm1251 = vcmp.lt.s32.totalorder %v1197, 480
          %vm1252 = vcmp.lt.s32.totalorder %v1198, 480
          %vm1253 = vcmp.lt.s32.totalorder %v1199, 480
          %vm1254 = vcmp.lt.s32.totalorder %v1200, 480
          %vm1255 = vcmp.lt.s32.totalorder %v1201, 480
          %1256 = vset.pattern.permute.xlu0 5
          %1257 = vperm.xlu0 %1256, %v1172
          %v1258 = vpop.permute.xlu0 %1257
          %1259 = vset.pattern.permute.xlu0 5
          %1260 = vperm.xlu0 %1259, %v1173
          %v1261 = vpop.permute.xlu0 %1260
          %1262 = vset.pattern.permute.xlu0 5
          %1263 = vperm.xlu0 %1262, %v1174
          %v1264 = vpop.permute.xlu0 %1263
          %1265 = vset.pattern.permute.xlu0 5
          %1266 = vperm.xlu0 %1265, %v1175
          %v1267 = vpop.permute.xlu0 %1266
          %v1268 = vsel %vm1251, %v1258, %v1231
          %v1269 = vsel %vm1252, %v1258, %v1232
          %v1270 = vsel %vm1253, %v1258, %v1233
          %v1271 = vsel %vm1254, %v1258, %v1234
          %v1272 = vsel %vm1255, %v1258, %v1235
          %v1273 = vsel %vm1251, %v1261, %v1236
          %v1274 = vsel %vm1252, %v1261, %v1237
          %v1275 = vsel %vm1253, %v1261, %v1238
          %v1276 = vsel %vm1254, %v1261, %v1239
          %v1277 = vsel %vm1255, %v1261, %v1240
          %v1278 = vsel %vm1251, %v1264, %v1241
          %v1279 = vsel %vm1252, %v1264, %v1242
          %v1280 = vsel %vm1253, %v1264, %v1243
          %v1281 = vsel %vm1254, %v1264, %v1244
          %v1282 = vsel %vm1255, %v1264, %v1245
          %v1283 = vsel %vm1251, %v1267, %v1246
          %v1284 = vsel %vm1252, %v1267, %v1247
          %v1285 = vsel %vm1253, %v1267, %v1248
          %v1286 = vsel %vm1254, %v1267, %v1249
          %v1287 = vsel %vm1255, %v1267, %v1250
          %vm1288 = vcmp.lt.s32.totalorder %v1197, 400
          %vm1289 = vcmp.lt.s32.totalorder %v1198, 400
          %vm1290 = vcmp.lt.s32.totalorder %v1199, 400
          %vm1291 = vcmp.lt.s32.totalorder %v1200, 400
          %vm1292 = vcmp.lt.s32.totalorder %v1201, 400
          %1293 = vset.pattern.permute.xlu0 4
          %1294 = vperm.xlu0 %1293, %v1172
          %v1295 = vpop.permute.xlu0 %1294
          %1296 = vset.pattern.permute.xlu0 4
          %1297 = vperm.xlu0 %1296, %v1173
          %v1298 = vpop.permute.xlu0 %1297
          %1299 = vset.pattern.permute.xlu0 4
          %1300 = vperm.xlu0 %1299, %v1174
          %v1301 = vpop.permute.xlu0 %1300
          %1302 = vset.pattern.permute.xlu0 4
          %1303 = vperm.xlu0 %1302, %v1175
          %v1304 = vpop.permute.xlu0 %1303
          %v1305 = vsel %vm1288, %v1295, %v1268
          %v1306 = vsel %vm1289, %v1295, %v1269
          %v1307 = vsel %vm1290, %v1295, %v1270
          %v1308 = vsel %vm1291, %v1295, %v1271
          %v1309 = vsel %vm1292, %v1295, %v1272
          %v1310 = vsel %vm1288, %v1298, %v1273
          %v1311 = vsel %vm1289, %v1298, %v1274
          %v1312 = vsel %vm1290, %v1298, %v1275
          %v1313 = vsel %vm1291, %v1298, %v1276
          %v1314 = vsel %vm1292, %v1298, %v1277
          %v1315 = vsel %vm1288, %v1301, %v1278
          %v1316 = vsel %vm1289, %v1301, %v1279
          %v1317 = vsel %vm1290, %v1301, %v1280
          %v1318 = vsel %vm1291, %v1301, %v1281
          %v1319 = vsel %vm1292, %v1301, %v1282
          %v1320 = vsel %vm1288, %v1304, %v1283
          %v1321 = vsel %vm1289, %v1304, %v1284
          %v1322 = vsel %vm1290, %v1304, %v1285
          %v1323 = vsel %vm1291, %v1304, %v1286
          %v1324 = vsel %vm1292, %v1304, %v1287
          %vm1325 = vcmp.lt.s32.totalorder %v1197, 320
          %vm1326 = vcmp.lt.s32.totalorder %v1198, 320
          %vm1327 = vcmp.lt.s32.totalorder %v1199, 320
          %vm1328 = vcmp.lt.s32.totalorder %v1200, 320
          %vm1329 = vcmp.lt.s32.totalorder %v1201, 320
          %1330 = vset.pattern.permute.xlu0 3
          %1331 = vperm.xlu0 %1330, %v1172
          %v1332 = vpop.permute.xlu0 %1331
          %1333 = vset.pattern.permute.xlu0 3
          %1334 = vperm.xlu0 %1333, %v1173
          %v1335 = vpop.permute.xlu0 %1334
          %1336 = vset.pattern.permute.xlu0 3
          %1337 = vperm.xlu0 %1336, %v1174
          %v1338 = vpop.permute.xlu0 %1337
          %1339 = vset.pattern.permute.xlu0 3
          %1340 = vperm.xlu0 %1339, %v1175
          %v1341 = vpop.permute.xlu0 %1340
          %v1342 = vsel %vm1325, %v1332, %v1305
          %v1343 = vsel %vm1326, %v1332, %v1306
          %v1344 = vsel %vm1327, %v1332, %v1307
          %v1345 = vsel %vm1328, %v1332, %v1308
          %v1346 = vsel %vm1329, %v1332, %v1309
          %v1347 = vsel %vm1325, %v1335, %v1310
          %v1348 = vsel %vm1326, %v1335, %v1311
          %v1349 = vsel %vm1327, %v1335, %v1312
          %v1350 = vsel %vm1328, %v1335, %v1313
          %v1351 = vsel %vm1329, %v1335, %v1314
          %v1352 = vsel %vm1325, %v1338, %v1315
          %v1353 = vsel %vm1326, %v1338, %v1316
          %v1354 = vsel %vm1327, %v1338, %v1317
          %v1355 = vsel %vm1328, %v1338, %v1318
          %v1356 = vsel %vm1329, %v1338, %v1319
          %v1357 = vsel %vm1325, %v1341, %v1320
          %v1358 = vsel %vm1326, %v1341, %v1321
          %v1359 = vsel %vm1327, %v1341, %v1322
          %v1360 = vsel %vm1328, %v1341, %v1323
          %v1361 = vsel %vm1329, %v1341, %v1324
          %vm1362 = vcmp.lt.s32.totalorder %v1197, 240
          %vm1363 = vcmp.lt.s32.totalorder %v1198, 240
          %vm1364 = vcmp.lt.s32.totalorder %v1199, 240
          %vm1365 = vcmp.lt.s32.totalorder %v1200, 240
          %vm1366 = vcmp.lt.s32.totalorder %v1201, 240
          %1367 = vset.pattern.permute.xlu0 2
          %1368 = vperm.xlu0 %1367, %v1172
          %v1369 = vpop.permute.xlu0 %1368
          %1370 = vset.pattern.permute.xlu0 2
          %1371 = vperm.xlu0 %1370, %v1173
          %v1372 = vpop.permute.xlu0 %1371
          %1373 = vset.pattern.permute.xlu0 2
          %1374 = vperm.xlu0 %1373, %v1174
          %v1375 = vpop.permute.xlu0 %1374
          %1376 = vset.pattern.permute.xlu0 2
          %1377 = vperm.xlu0 %1376, %v1175
          %v1378 = vpop.permute.xlu0 %1377
          %v1379 = vsel %vm1362, %v1369, %v1342
          %v1380 = vsel %vm1363, %v1369, %v1343
          %v1381 = vsel %vm1364, %v1369, %v1344
          %v1382 = vsel %vm1365, %v1369, %v1345
          %v1383 = vsel %vm1366, %v1369, %v1346
          %v1384 = vsel %vm1362, %v1372, %v1347
          %v1385 = vsel %vm1363, %v1372, %v1348
          %v1386 = vsel %vm1364, %v1372, %v1349
          %v1387 = vsel %vm1365, %v1372, %v1350
          %v1388 = vsel %vm1366, %v1372, %v1351
          %v1389 = vsel %vm1362, %v1375, %v1352
          %v1390 = vsel %vm1363, %v1375, %v1353
          %v1391 = vsel %vm1364, %v1375, %v1354
          %v1392 = vsel %vm1365, %v1375, %v1355
          %v1393 = vsel %vm1366, %v1375, %v1356
          %v1394 = vsel %vm1362, %v1378, %v1357
          %v1395 = vsel %vm1363, %v1378, %v1358
          %v1396 = vsel %vm1364, %v1378, %v1359
          %v1397 = vsel %vm1365, %v1378, %v1360
          %v1398 = vsel %vm1366, %v1378, %v1361
          %vm1399 = vcmp.lt.s32.totalorder %v1197, 160
          %vm1400 = vcmp.lt.s32.totalorder %v1198, 160
          %vm1401 = vcmp.lt.s32.totalorder %v1199, 160
          %vm1402 = vcmp.lt.s32.totalorder %v1200, 160
          %vm1403 = vcmp.lt.s32.totalorder %v1201, 160
          %1404 = vset.pattern.permute.xlu0 1
          %1405 = vperm.xlu0 %1404, %v1172
          %v1406 = vpop.permute.xlu0 %1405
          %1407 = vset.pattern.permute.xlu0 1
          %1408 = vperm.xlu0 %1407, %v1173
          %v1409 = vpop.permute.xlu0 %1408
          %1410 = vset.pattern.permute.xlu0 1
          %1411 = vperm.xlu0 %1410, %v1174
          %v1412 = vpop.permute.xlu0 %1411
          %1413 = vset.pattern.permute.xlu0 1
          %1414 = vperm.xlu0 %1413, %v1175
          %v1415 = vpop.permute.xlu0 %1414
          %v1416 = vsel %vm1399, %v1406, %v1379
          %v1417 = vsel %vm1400, %v1406, %v1380
          %v1418 = vsel %vm1401, %v1406, %v1381
          %v1419 = vsel %vm1402, %v1406, %v1382
          %v1420 = vsel %vm1403, %v1406, %v1383
          %v1421 = vsel %vm1399, %v1409, %v1384
          %v1422 = vsel %vm1400, %v1409, %v1385
          %v1423 = vsel %vm1401, %v1409, %v1386
          %v1424 = vsel %vm1402, %v1409, %v1387
          %v1425 = vsel %vm1403, %v1409, %v1388
          %v1426 = vsel %vm1399, %v1412, %v1389
          %v1427 = vsel %vm1400, %v1412, %v1390
          %v1428 = vsel %vm1401, %v1412, %v1391
          %v1429 = vsel %vm1402, %v1412, %v1392
          %v1430 = vsel %vm1403, %v1412, %v1393
          %v1431 = vsel %vm1399, %v1415, %v1394
          %v1432 = vsel %vm1400, %v1415, %v1395
          %v1433 = vsel %vm1401, %v1415, %v1396
          %v1434 = vsel %vm1402, %v1415, %v1397
          %v1435 = vsel %vm1403, %v1415, %v1398
          %vm1436 = vcmp.lt.s32.totalorder %v1197, 80
          %vm1437 = vcmp.lt.s32.totalorder %v1198, 80
          %vm1438 = vcmp.lt.s32.totalorder %v1199, 80
          %vm1439 = vcmp.lt.s32.totalorder %v1200, 80
          %vm1440 = vcmp.lt.s32.totalorder %v1201, 80
          %1441 = vset.pattern.permute.xlu0 0
          %1442 = vperm.xlu0 %1441, %v1172
          %v1443 = vpop.permute.xlu0 %1442
          %1444 = vset.pattern.permute.xlu0 0
          %1445 = vperm.xlu0 %1444, %v1173
          %v1446 = vpop.permute.xlu0 %1445
          %1447 = vset.pattern.permute.xlu0 0
          %1448 = vperm.xlu0 %1447, %v1174
          %v1449 = vpop.permute.xlu0 %1448
          %1450 = vset.pattern.permute.xlu0 0
          %1451 = vperm.xlu0 %1450, %v1175
          %v1452 = vpop.permute.xlu0 %1451
          %v1453 = vsel %vm1436, %v1443, %v1416
          %v1454 = vsel %vm1437, %v1443, %v1417
          %v1455 = vsel %vm1438, %v1443, %v1418
          %v1456 = vsel %vm1439, %v1443, %v1419
          %v1457 = vsel %vm1440, %v1443, %v1420
          %v1458 = vsel %vm1436, %v1446, %v1421
          %v1459 = vsel %vm1437, %v1446, %v1422
          %v1460 = vsel %vm1438, %v1446, %v1423
          %v1461 = vsel %vm1439, %v1446, %v1424
          %v1462 = vsel %vm1440, %v1446, %v1425
          %v1463 = vsel %vm1436, %v1449, %v1426
          %v1464 = vsel %vm1437, %v1449, %v1427
          %v1465 = vsel %vm1438, %v1449, %v1428
          %v1466 = vsel %vm1439, %v1449, %v1429
          %v1467 = vsel %vm1440, %v1449, %v1430
          %v1468 = vsel %vm1436, %v1452, %v1431
          %v1469 = vsel %vm1437, %v1452, %v1432
          %v1470 = vsel %vm1438, %v1452, %v1433
          %v1471 = vsel %vm1439, %v1452, %v1434
          %v1472 = vsel %vm1440, %v1452, %v1435
          %vm1473 = vcmp.eq.s32.totalorder %v1197, %v1453
          %vm1474 = vcmp.eq.s32.totalorder %v1198, %v1454
          %vm1475 = vcmp.eq.s32.totalorder %v1199, %v1455
          %vm1476 = vcmp.eq.s32.totalorder %v1200, %v1456
          %vm1477 = vcmp.eq.s32.totalorder %v1201, %v1457
          %vm1478 = vcmp.eq.s32.totalorder %v1197, %v1458
          %vm1479 = vcmp.eq.s32.totalorder %v1198, %v1459
          %vm1480 = vcmp.eq.s32.totalorder %v1199, %v1460
          %vm1481 = vcmp.eq.s32.totalorder %v1200, %v1461
          %vm1482 = vcmp.eq.s32.totalorder %v1201, %v1462
          %vm1483 = vcmp.eq.s32.totalorder %v1197, %v1463
          %vm1484 = vcmp.eq.s32.totalorder %v1198, %v1464
          %vm1485 = vcmp.eq.s32.totalorder %v1199, %v1465
          %vm1486 = vcmp.eq.s32.totalorder %v1200, %v1466
          %vm1487 = vcmp.eq.s32.totalorder %v1201, %v1467
          %vm1488 = vcmp.eq.s32.totalorder %v1197, %v1468
          %vm1489 = vcmp.eq.s32.totalorder %v1198, %v1469
          %vm1490 = vcmp.eq.s32.totalorder %v1199, %v1470
          %vm1491 = vcmp.eq.s32.totalorder %v1200, %v1471
          %vm1492 = vcmp.eq.s32.totalorder %v1201, %v1472
          %vm1493 = vcmp.ge.s32.totalorder %v1453, 0
          %vm1494 = vcmp.ge.s32.totalorder %v1454, 0
          %vm1495 = vcmp.ge.s32.totalorder %v1455, 0
          %vm1496 = vcmp.ge.s32.totalorder %v1456, 0
          %vm1497 = vcmp.ge.s32.totalorder %v1457, 0
          %vm1498 = vcmp.ge.s32.totalorder %v1458, 0
          %vm1499 = vcmp.ge.s32.totalorder %v1459, 0
          %vm1500 = vcmp.ge.s32.totalorder %v1460, 0
          %vm1501 = vcmp.ge.s32.totalorder %v1461, 0
          %vm1502 = vcmp.ge.s32.totalorder %v1462, 0
          %vm1503 = vcmp.ge.s32.totalorder %v1463, 0
          %vm1504 = vcmp.ge.s32.totalorder %v1464, 0
          %vm1505 = vcmp.ge.s32.totalorder %v1465, 0
          %vm1506 = vcmp.ge.s32.totalorder %v1466, 0
          %vm1507 = vcmp.ge.s32.totalorder %v1467, 0
          %vm1508 = vcmp.ge.s32.totalorder %v1468, 0
          %vm1509 = vcmp.ge.s32.totalorder %v1469, 0
          %vm1510 = vcmp.ge.s32.totalorder %v1470, 0
          %vm1511 = vcmp.ge.s32.totalorder %v1471, 0
          %vm1512 = vcmp.ge.s32.totalorder %v1472, 0
          %v1513 = vxor.u32 %v1148, 2147483648
          %v1514 = vxor.u32 %v1149, 2147483648
          %v1515 = vxor.u32 %v1150, 2147483648
          %v1516 = vxor.u32 %v1151, 2147483648
          %v1517 = vxor.u32 %v1152, 2147483648
          %v1518 = vxor.u32 %v1153, 2147483648
          %v1519 = vxor.u32 %v1154, 2147483648
          %v1520 = vxor.u32 %v1155, 2147483648
          %v1521 = vxor.u32 %v1156, 2147483648
          %v1522 = vxor.u32 %v1157, 2147483648
          %v1523 = vxor.u32 %v1158, 2147483648
          %v1524 = vxor.u32 %v1159, 2147483648
          %v1525 = vxor.u32 %v1160, 2147483648
          %v1526 = vxor.u32 %v1161, 2147483648
          %v1527 = vxor.u32 %v1162, 2147483648
          %v1528 = vxor.u32 %v1163, 2147483648
          %v1529 = vxor.u32 %v1164, 2147483648
          %v1530 = vxor.u32 %v1165, 2147483648
          %v1531 = vxor.u32 %v1166, 2147483648
          %v1532 = vxor.u32 %v1167, 2147483648
          %v1533 = vmul.f32 %v1513, 1.442695
          %v1534 = vpow.pop %v1533
          %v1535 = vmul.f32 %v1514, 1.442695
          %v1536 = vpow.pop %v1535
          %v1537 = vmul.f32 %v1515, 1.442695
          %v1538 = vpow.pop %v1537
          %v1539 = vmul.f32 %v1516, 1.442695
          %v1540 = vpow.pop %v1539
          %v1541 = vmul.f32 %v1517, 1.442695
          %v1542 = vpow.pop %v1541
          %v1543 = vmul.f32 %v1518, 1.442695
          %v1544 = vpow.pop %v1543
          %v1545 = vmul.f32 %v1519, 1.442695
          %v1546 = vpow.pop %v1545
          %v1547 = vmul.f32 %v1520, 1.442695
          %v1548 = vpow.pop %v1547
          %v1549 = vmul.f32 %v1521, 1.442695
          %v1550 = vpow.pop %v1549
          %v1551 = vmul.f32 %v1522, 1.442695
          %v1552 = vpow.pop %v1551
          %v1553 = vmul.f32 %v1523, 1.442695
          %v1554 = vpow.pop %v1553
          %v1555 = vmul.f32 %v1524, 1.442695
          %v1556 = vpow.pop %v1555
          %v1557 = vmul.f32 %v1525, 1.442695
          %v1558 = vpow.pop %v1557
          %v1559 = vmul.f32 %v1526, 1.442695
          %v1560 = vpow.pop %v1559
          %v1561 = vmul.f32 %v1527, 1.442695
          %v1562 = vpow.pop %v1561
          %v1563 = vmul.f32 %v1528, 1.442695
          %v1564 = vpow.pop %v1563
          %v1565 = vmul.f32 %v1529, 1.442695
          %v1566 = vpow.pop %v1565
          %v1567 = vmul.f32 %v1530, 1.442695
          %v1568 = vpow.pop %v1567
          %v1569 = vmul.f32 %v1531, 1.442695
          %v1570 = vpow.pop %v1569
          %v1571 = vmul.f32 %v1532, 1.442695
          %v1572 = vpow.pop %v1571
          %v1573 = vadd.f32 %v1534, 1.0
          %v1574 = vadd.f32 %v1536, 1.0
          %v1575 = vadd.f32 %v1538, 1.0
          %v1576 = vadd.f32 %v1540, 1.0
          %v1577 = vadd.f32 %v1542, 1.0
          %v1578 = vadd.f32 %v1544, 1.0
          %v1579 = vadd.f32 %v1546, 1.0
          %v1580 = vadd.f32 %v1548, 1.0
          %v1581 = vadd.f32 %v1550, 1.0
          %v1582 = vadd.f32 %v1552, 1.0
          %v1583 = vadd.f32 %v1554, 1.0
          %v1584 = vadd.f32 %v1556, 1.0
          %v1585 = vadd.f32 %v1558, 1.0
          %v1586 = vadd.f32 %v1560, 1.0
          %v1587 = vadd.f32 %v1562, 1.0
          %v1588 = vadd.f32 %v1564, 1.0
          %v1589 = vadd.f32 %v1566, 1.0
          %v1590 = vadd.f32 %v1568, 1.0
          %v1591 = vadd.f32 %v1570, 1.0
          %v1592 = vadd.f32 %v1572, 1.0
          %v1593 = vrcp.pop %v1573
          %v1594 = vmul.f32 1.0, %v1593
          %v1595 = vrcp.pop %v1574
          %v1596 = vmul.f32 1.0, %v1595
          %v1597 = vrcp.pop %v1575
          %v1598 = vmul.f32 1.0, %v1597
          %v1599 = vrcp.pop %v1576
          %v1600 = vmul.f32 1.0, %v1599
          %v1601 = vrcp.pop %v1577
          %v1602 = vmul.f32 1.0, %v1601
          %v1603 = vrcp.pop %v1578
          %v1604 = vmul.f32 1.0, %v1603
          %v1605 = vrcp.pop %v1579
          %v1606 = vmul.f32 1.0, %v1605
          %v1607 = vrcp.pop %v1580
          %v1608 = vmul.f32 1.0, %v1607
          %v1609 = vrcp.pop %v1581
          %v1610 = vmul.f32 1.0, %v1609
          %v1611 = vrcp.pop %v1582
          %v1612 = vmul.f32 1.0, %v1611
          %v1613 = vrcp.pop %v1583
          %v1614 = vmul.f32 1.0, %v1613
          %v1615 = vrcp.pop %v1584
          %v1616 = vmul.f32 1.0, %v1615
          %v1617 = vrcp.pop %v1585
          %v1618 = vmul.f32 1.0, %v1617
          %v1619 = vrcp.pop %v1586
          %v1620 = vmul.f32 1.0, %v1619
          %v1621 = vrcp.pop %v1587
          %v1622 = vmul.f32 1.0, %v1621
          %v1623 = vrcp.pop %v1588
          %v1624 = vmul.f32 1.0, %v1623
          %v1625 = vrcp.pop %v1589
          %v1626 = vmul.f32 1.0, %v1625
          %v1627 = vrcp.pop %v1590
          %v1628 = vmul.f32 1.0, %v1627
          %v1629 = vrcp.pop %v1591
          %v1630 = vmul.f32 1.0, %v1629
          %v1631 = vrcp.pop %v1592
          %v1632 = vmul.f32 1.0, %v1631
          %v1633 = vmax.f32 %v1594, 1e-06
          %v1634 = vmax.f32 %v1596, 1e-06
          %v1635 = vmax.f32 %v1598, 1e-06
          %v1636 = vmax.f32 %v1600, 1e-06
          %v1637 = vmax.f32 %v1602, 1e-06
          %v1638 = vmax.f32 %v1604, 1e-06
          %v1639 = vmax.f32 %v1606, 1e-06
          %v1640 = vmax.f32 %v1608, 1e-06
          %v1641 = vmax.f32 %v1610, 1e-06
          %v1642 = vmax.f32 %v1612, 1e-06
          %v1643 = vmax.f32 %v1614, 1e-06
          %v1644 = vmax.f32 %v1616, 1e-06
          %v1645 = vmax.f32 %v1618, 1e-06
          %v1646 = vmax.f32 %v1620, 1e-06
          %v1647 = vmax.f32 %v1622, 1e-06
          %v1648 = vmax.f32 %v1624, 1e-06
          %v1649 = vmax.f32 %v1626, 1e-06
          %v1650 = vmax.f32 %v1628, 1e-06
          %v1651 = vmax.f32 %v1630, 1e-06
          %v1652 = vmax.f32 %v1632, 1e-06
          %v1653 = vmin.f32 %v1633, 0.999999
          %v1654 = vmin.f32 %v1634, 0.999999
          %v1655 = vmin.f32 %v1635, 0.999999
          %v1656 = vmin.f32 %v1636, 0.999999
          %v1657 = vmin.f32 %v1637, 0.999999
          %v1658 = vmin.f32 %v1638, 0.999999
          %v1659 = vmin.f32 %v1639, 0.999999
          %v1660 = vmin.f32 %v1640, 0.999999
          %v1661 = vmin.f32 %v1641, 0.999999
          %v1662 = vmin.f32 %v1642, 0.999999
          %v1663 = vmin.f32 %v1643, 0.999999
          %v1664 = vmin.f32 %v1644, 0.999999
          %v1665 = vmin.f32 %v1645, 0.999999
          %v1666 = vmin.f32 %v1646, 0.999999
          %v1667 = vmin.f32 %v1647, 0.999999
          %v1668 = vmin.f32 %v1648, 0.999999
          %v1669 = vmin.f32 %v1649, 0.999999
          %v1670 = vmin.f32 %v1650, 0.999999
          %v1671 = vmin.f32 %v1651, 0.999999
          %v1672 = vmin.f32 %v1652, 0.999999
          %v1673 = vlog2.pop %v1653
          %v1674 = vmul.f32 %v1673, 0.6931472
          %v1675 = vlog2.pop %v1654
          %v1676 = vmul.f32 %v1675, 0.6931472
          %v1677 = vlog2.pop %v1655
          %v1678 = vmul.f32 %v1677, 0.6931472
          %v1679 = vlog2.pop %v1656
          %v1680 = vmul.f32 %v1679, 0.6931472
          %v1681 = vlog2.pop %v1657
          %v1682 = vmul.f32 %v1681, 0.6931472
          %v1683 = vlog2.pop %v1658
          %v1684 = vmul.f32 %v1683, 0.6931472
          %v1685 = vlog2.pop %v1659
          %v1686 = vmul.f32 %v1685, 0.6931472
          %v1687 = vlog2.pop %v1660
          %v1688 = vmul.f32 %v1687, 0.6931472
          %v1689 = vlog2.pop %v1661
          %v1690 = vmul.f32 %v1689, 0.6931472
          %v1691 = vlog2.pop %v1662
          %v1692 = vmul.f32 %v1691, 0.6931472
          %v1693 = vlog2.pop %v1663
          %v1694 = vmul.f32 %v1693, 0.6931472
          %v1695 = vlog2.pop %v1664
          %v1696 = vmul.f32 %v1695, 0.6931472
          %v1697 = vlog2.pop %v1665
          %v1698 = vmul.f32 %v1697, 0.6931472
          %v1699 = vlog2.pop %v1666
          %v1700 = vmul.f32 %v1699, 0.6931472
          %v1701 = vlog2.pop %v1667
          %v1702 = vmul.f32 %v1701, 0.6931472
          %v1703 = vlog2.pop %v1668
          %v1704 = vmul.f32 %v1703, 0.6931472
          %v1705 = vlog2.pop %v1669
          %v1706 = vmul.f32 %v1705, 0.6931472
          %v1707 = vlog2.pop %v1670
          %v1708 = vmul.f32 %v1707, 0.6931472
          %v1709 = vlog2.pop %v1671
          %v1710 = vmul.f32 %v1709, 0.6931472
          %v1711 = vlog2.pop %v1672
          %v1712 = vmul.f32 %v1711, 0.6931472
          %v1713 = vsub.f32 %v1674, %v1148
          %v1714 = vsub.f32 %v1676, %v1149
          %v1715 = vsub.f32 %v1678, %v1150
          %v1716 = vsub.f32 %v1680, %v1151
          %v1717 = vsub.f32 %v1682, %v1152
          %v1718 = vsub.f32 %v1684, %v1153
          %v1719 = vsub.f32 %v1686, %v1154
          %v1720 = vsub.f32 %v1688, %v1155
          %v1721 = vsub.f32 %v1690, %v1156
          %v1722 = vsub.f32 %v1692, %v1157
          %v1723 = vsub.f32 %v1694, %v1158
          %v1724 = vsub.f32 %v1696, %v1159
          %v1725 = vsub.f32 %v1698, %v1160
          %v1726 = vsub.f32 %v1700, %v1161
          %v1727 = vsub.f32 %v1702, %v1162
          %v1728 = vsub.f32 %v1704, %v1163
          %v1729 = vsub.f32 %v1706, %v1164
          %v1730 = vsub.f32 %v1708, %v1165
          %v1731 = vsub.f32 %v1710, %v1166
          %v1732 = vsub.f32 %v1712, %v1167
          %v1733 = vmax.f32 %v1713, -13.815511
          %v1734 = vmax.f32 %v1714, -13.815511
          %v1735 = vmax.f32 %v1715, -13.815511
          %v1736 = vmax.f32 %v1716, -13.815511
          %v1737 = vmax.f32 %v1717, -13.815511
          %v1738 = vmax.f32 %v1718, -13.815511
          %v1739 = vmax.f32 %v1719, -13.815511
          %v1740 = vmax.f32 %v1720, -13.815511
          %v1741 = vmax.f32 %v1721, -13.815511
          %v1742 = vmax.f32 %v1722, -13.815511
          %v1743 = vmax.f32 %v1723, -13.815511
          %v1744 = vmax.f32 %v1724, -13.815511
          %v1745 = vmax.f32 %v1725, -13.815511
          %v1746 = vmax.f32 %v1726, -13.815511
          %v1747 = vmax.f32 %v1727, -13.815511
          %v1748 = vmax.f32 %v1728, -13.815511
          %v1749 = vmax.f32 %v1729, -13.815511
          %v1750 = vmax.f32 %v1730, -13.815511
          %v1751 = vmax.f32 %v1731, -13.815511
          %v1752 = vmax.f32 %v1732, -13.815511
          %v1753 = vmin.f32 %v1733, -1.0000005e-06
          %v1754 = vmin.f32 %v1734, -1.0000005e-06
          %v1755 = vmin.f32 %v1735, -1.0000005e-06
          %v1756 = vmin.f32 %v1736, -1.0000005e-06
          %v1757 = vmin.f32 %v1737, -1.0000005e-06
          %v1758 = vmin.f32 %v1738, -1.0000005e-06
          %v1759 = vmin.f32 %v1739, -1.0000005e-06
          %v1760 = vmin.f32 %v1740, -1.0000005e-06
          %v1761 = vmin.f32 %v1741, -1.0000005e-06
          %v1762 = vmin.f32 %v1742, -1.0000005e-06
          %v1763 = vmin.f32 %v1743, -1.0000005e-06
          %v1764 = vmin.f32 %v1744, -1.0000005e-06
          %v1765 = vmin.f32 %v1745, -1.0000005e-06
          %v1766 = vmin.f32 %v1746, -1.0000005e-06
          %v1767 = vmin.f32 %v1747, -1.0000005e-06
          %v1768 = vmin.f32 %v1748, -1.0000005e-06
          %v1769 = vmin.f32 %v1749, -1.0000005e-06
          %v1770 = vmin.f32 %v1750, -1.0000005e-06
          %v1771 = vmin.f32 %v1751, -1.0000005e-06
          %v1772 = vmin.f32 %v1752, -1.0000005e-06
          %v1773 = vsub.f32 1.0, %v1653
          %v1774 = vsub.f32 1.0, %v1654
          %v1775 = vsub.f32 1.0, %v1655
          %v1776 = vsub.f32 1.0, %v1656
          %v1777 = vsub.f32 1.0, %v1657
          %v1778 = vsub.f32 1.0, %v1658
          %v1779 = vsub.f32 1.0, %v1659
          %v1780 = vsub.f32 1.0, %v1660
          %v1781 = vsub.f32 1.0, %v1661
          %v1782 = vsub.f32 1.0, %v1662
          %v1783 = vsub.f32 1.0, %v1663
          %v1784 = vsub.f32 1.0, %v1664
          %v1785 = vsub.f32 1.0, %v1665
          %v1786 = vsub.f32 1.0, %v1666
          %v1787 = vsub.f32 1.0, %v1667
          %v1788 = vsub.f32 1.0, %v1668
          %v1789 = vsub.f32 1.0, %v1669
          %v1790 = vsub.f32 1.0, %v1670
          %v1791 = vsub.f32 1.0, %v1671
          %v1792 = vsub.f32 1.0, %v1672
          %v1793 = vmul.f32 %v1773, %v1773
          %v1794 = vmul.f32 %v1774, %v1774
          %v1795 = vmul.f32 %v1775, %v1775
          %v1796 = vmul.f32 %v1776, %v1776
          %v1797 = vmul.f32 %v1777, %v1777
          %v1798 = vmul.f32 %v1778, %v1778
          %v1799 = vmul.f32 %v1779, %v1779
          %v1800 = vmul.f32 %v1780, %v1780
          %v1801 = vmul.f32 %v1781, %v1781
          %v1802 = vmul.f32 %v1782, %v1782
          %v1803 = vmul.f32 %v1783, %v1783
          %v1804 = vmul.f32 %v1784, %v1784
          %v1805 = vmul.f32 %v1785, %v1785
          %v1806 = vmul.f32 %v1786, %v1786
          %v1807 = vmul.f32 %v1787, %v1787
          %v1808 = vmul.f32 %v1788, %v1788
          %v1809 = vmul.f32 %v1789, %v1789
          %v1810 = vmul.f32 %v1790, %v1790
          %v1811 = vmul.f32 %v1791, %v1791
          %v1812 = vmul.f32 %v1792, %v1792
          %v1813 = vmul.f32 %v1653, %v1653
          %v1814 = vmul.f32 %v1654, %v1654
          %v1815 = vmul.f32 %v1655, %v1655
          %v1816 = vmul.f32 %v1656, %v1656
          %v1817 = vmul.f32 %v1657, %v1657
          %v1818 = vmul.f32 %v1658, %v1658
          %v1819 = vmul.f32 %v1659, %v1659
          %v1820 = vmul.f32 %v1660, %v1660
          %v1821 = vmul.f32 %v1661, %v1661
          %v1822 = vmul.f32 %v1662, %v1662
          %v1823 = vmul.f32 %v1663, %v1663
          %v1824 = vmul.f32 %v1664, %v1664
          %v1825 = vmul.f32 %v1665, %v1665
          %v1826 = vmul.f32 %v1666, %v1666
          %v1827 = vmul.f32 %v1667, %v1667
          %v1828 = vmul.f32 %v1668, %v1668
          %v1829 = vmul.f32 %v1669, %v1669
          %v1830 = vmul.f32 %v1670, %v1670
          %v1831 = vmul.f32 %v1671, %v1671
          %v1832 = vmul.f32 %v1672, %v1672
          %v1833 = vmul.f32 %v1793, -0.25
          %v1834 = vmul.f32 %v1794, -0.25
          %v1835 = vmul.f32 %v1795, -0.25
          %v1836 = vmul.f32 %v1796, -0.25
          %v1837 = vmul.f32 %v1797, -0.25
          %v1838 = vmul.f32 %v1798, -0.25
          %v1839 = vmul.f32 %v1799, -0.25
          %v1840 = vmul.f32 %v1800, -0.25
          %v1841 = vmul.f32 %v1801, -0.25
          %v1842 = vmul.f32 %v1802, -0.25
          %v1843 = vmul.f32 %v1803, -0.25
          %v1844 = vmul.f32 %v1804, -0.25
          %v1845 = vmul.f32 %v1805, -0.25
          %v1846 = vmul.f32 %v1806, -0.25
          %v1847 = vmul.f32 %v1807, -0.25
          %v1848 = vmul.f32 %v1808, -0.25
          %v1849 = vmul.f32 %v1809, -0.25
          %v1850 = vmul.f32 %v1810, -0.25
          %v1851 = vmul.f32 %v1811, -0.25
          %v1852 = vmul.f32 %v1812, -0.25
          %v1853 = vmul.f32 %v1833, %v1674
          %v1854 = vmul.f32 %v1834, %v1676
          %v1855 = vmul.f32 %v1835, %v1678
          %v1856 = vmul.f32 %v1836, %v1680
          %v1857 = vmul.f32 %v1837, %v1682
          %v1858 = vmul.f32 %v1838, %v1684
          %v1859 = vmul.f32 %v1839, %v1686
          %v1860 = vmul.f32 %v1840, %v1688
          %v1861 = vmul.f32 %v1841, %v1690
          %v1862 = vmul.f32 %v1842, %v1692
          %v1863 = vmul.f32 %v1843, %v1694
          %v1864 = vmul.f32 %v1844, %v1696
          %v1865 = vmul.f32 %v1845, %v1698
          %v1866 = vmul.f32 %v1846, %v1700
          %v1867 = vmul.f32 %v1847, %v1702
          %v1868 = vmul.f32 %v1848, %v1704
          %v1869 = vmul.f32 %v1849, %v1706
          %v1870 = vmul.f32 %v1850, %v1708
          %v1871 = vmul.f32 %v1851, %v1710
          %v1872 = vmul.f32 %v1852, %v1712
          %v1873 = vmul.f32 %v1813, -0.75
          %v1874 = vmul.f32 %v1814, -0.75
          %v1875 = vmul.f32 %v1815, -0.75
          %v1876 = vmul.f32 %v1816, -0.75
          %v1877 = vmul.f32 %v1817, -0.75
          %v1878 = vmul.f32 %v1818, -0.75
          %v1879 = vmul.f32 %v1819, -0.75
          %v1880 = vmul.f32 %v1820, -0.75
          %v1881 = vmul.f32 %v1821, -0.75
          %v1882 = vmul.f32 %v1822, -0.75
          %v1883 = vmul.f32 %v1823, -0.75
          %v1884 = vmul.f32 %v1824, -0.75
          %v1885 = vmul.f32 %v1825, -0.75
          %v1886 = vmul.f32 %v1826, -0.75
          %v1887 = vmul.f32 %v1827, -0.75
          %v1888 = vmul.f32 %v1828, -0.75
          %v1889 = vmul.f32 %v1829, -0.75
          %v1890 = vmul.f32 %v1830, -0.75
          %v1891 = vmul.f32 %v1831, -0.75
          %v1892 = vmul.f32 %v1832, -0.75
          %v1893 = vmul.f32 %v1873, %v1753
          %v1894 = vmul.f32 %v1874, %v1754
          %v1895 = vmul.f32 %v1875, %v1755
          %v1896 = vmul.f32 %v1876, %v1756
          %v1897 = vmul.f32 %v1877, %v1757
          %v1898 = vmul.f32 %v1878, %v1758
          %v1899 = vmul.f32 %v1879, %v1759
          %v1900 = vmul.f32 %v1880, %v1760
          %v1901 = vmul.f32 %v1881, %v1761
          %v1902 = vmul.f32 %v1882, %v1762
          %v1903 = vmul.f32 %v1883, %v1763
          %v1904 = vmul.f32 %v1884, %v1764
          %v1905 = vmul.f32 %v1885, %v1765
          %v1906 = vmul.f32 %v1886, %v1766
          %v1907 = vmul.f32 %v1887, %v1767
          %v1908 = vmul.f32 %v1888, %v1768
          %v1909 = vmul.f32 %v1889, %v1769
          %v1910 = vmul.f32 %v1890, %v1770
          %v1911 = vmul.f32 %v1891, %v1771
          %v1912 = vmul.f32 %v1892, %v1772
          %v1913 = vsel %vm1493, %v1893, 0.0
          %v1914 = vsel %vm1494, %v1894, 0.0
          %v1915 = vsel %vm1495, %v1895, 0.0
          %v1916 = vsel %vm1496, %v1896, 0.0
          %v1917 = vsel %vm1497, %v1897, 0.0
          %v1918 = vsel %vm1498, %v1898, 0.0
          %v1919 = vsel %vm1499, %v1899, 0.0
          %v1920 = vsel %vm1500, %v1900, 0.0
          %v1921 = vsel %vm1501, %v1901, 0.0
          %v1922 = vsel %vm1502, %v1902, 0.0
          %v1923 = vsel %vm1503, %v1903, 0.0
          %v1924 = vsel %vm1504, %v1904, 0.0
          %v1925 = vsel %vm1505, %v1905, 0.0
          %v1926 = vsel %vm1506, %v1906, 0.0
          %v1927 = vsel %vm1507, %v1907, 0.0
          %v1928 = vsel %vm1508, %v1908, 0.0
          %v1929 = vsel %vm1509, %v1909, 0.0
          %v1930 = vsel %vm1510, %v1910, 0.0
          %v1931 = vsel %vm1511, %v1911, 0.0
          %v1932 = vsel %vm1512, %v1912, 0.0
          %v1933 = vsel %vm1473, %v1853, %v1913
          %v1934 = vsel %vm1474, %v1854, %v1914
          %v1935 = vsel %vm1475, %v1855, %v1915
          %v1936 = vsel %vm1476, %v1856, %v1916
          %v1937 = vsel %vm1477, %v1857, %v1917
          %v1938 = vsel %vm1478, %v1858, %v1918
          %v1939 = vsel %vm1479, %v1859, %v1919
          %v1940 = vsel %vm1480, %v1860, %v1920
          %v1941 = vsel %vm1481, %v1861, %v1921
          %v1942 = vsel %vm1482, %v1862, %v1922
          %v1943 = vsel %vm1483, %v1863, %v1923
          %v1944 = vsel %vm1484, %v1864, %v1924
          %v1945 = vsel %vm1485, %v1865, %v1925
          %v1946 = vsel %vm1486, %v1866, %v1926
          %v1947 = vsel %vm1487, %v1867, %v1927
          %v1948 = vsel %vm1488, %v1868, %v1928
          %v1949 = vsel %vm1489, %v1869, %v1929
          %v1950 = vsel %vm1490, %v1870, %v1930
          %v1951 = vsel %vm1491, %v1871, %v1931
          %v1952 = vsel %vm1492, %v1872, %v1932
          %v1953 = vadd.f32 %v1176, %v1933
          %v1954 = vadd.f32 %v1177, %v1934
          %v1955 = vadd.f32 %v1178, %v1935
          %v1956 = vadd.f32 %v1179, %v1936
          %v1957 = vadd.f32 %v1180, %v1937
          %v1958 = vadd.f32 %v1181, %v1938
          %v1959 = vadd.f32 %v1182, %v1939
          %v1960 = vadd.f32 %v1183, %v1940
          %v1961 = vadd.f32 %v1184, %v1941
          %v1962 = vadd.f32 %v1185, %v1942
          %v1963 = vadd.f32 %v1186, %v1943
          %v1964 = vadd.f32 %v1187, %v1944
          %v1965 = vadd.f32 %v1188, %v1945
          %v1966 = vadd.f32 %v1189, %v1946
          %v1967 = vadd.f32 %v1190, %v1947
          %v1968 = vadd.f32 %v1191, %v1948
          %v1969 = vadd.f32 %v1192, %v1949
          %v1970 = vadd.f32 %v1193, %v1950
          %v1971 = vadd.f32 %v1194, %v1951
          %v1972 = vadd.f32 %v1195, %v1952
          %1973 = vst [vmem:[#allocation2] sm:$0xff] %v1953
          %1974 = vst [vmem:[#allocation2 + $0x8] sm:$0xff] %v1954
          %1975 = vst [vmem:[#allocation2 + $0x10] sm:$0xff] %v1955
          %1976 = vst [vmem:[#allocation2 + $0x18] sm:$0xff] %v1956
          %1977 = vst [vmem:[#allocation2 + $0x20] sm:$0xff] %v1957
          %1978 = vst [vmem:[#allocation2 + $0x28] sm:$0xff] %v1958
          %1979 = vst [vmem:[#allocation2 + $0x30] sm:$0xff] %v1959
          %1980 = vst [vmem:[#allocation2 + $0x38] sm:$0xff] %v1960
          %1981 = vst [vmem:[#allocation2 + $0x40] sm:$0xff] %v1961
          %1982 = vst [vmem:[#allocation2 + $0x48] sm:$0xff] %v1962
          %1983 = vst [vmem:[#allocation2 + $0x50] sm:$0xff] %v1963
          %1984 = vst [vmem:[#allocation2 + $0x58] sm:$0xff] %v1964
          %1985 = vst [vmem:[#allocation2 + $0x60] sm:$0xff] %v1965
          %1986 = vst [vmem:[#allocation2 + $0x68] sm:$0xff] %v1966
          %1987 = vst [vmem:[#allocation2 + $0x70] sm:$0xff] %v1967
          %1988 = vst [vmem:[#allocation2 + $0x78] sm:$0x1] %v1968
          %1989 = vst [vmem:[#allocation2 + $0x80] sm:$0x1] %v1969
          %1990 = vst [vmem:[#allocation2 + $0x88] sm:$0x1] %v1970
          %1991 = vst [vmem:[#allocation2 + $0x90] sm:$0x1] %v1971
          %1992 = vst [vmem:[#allocation2 + $0x98] sm:$0x1] %v1972
        $region44: #{tpu_custom_call.1} parent=27 // pred_fallthru
          _
        // Predicated region
        $region45: #{tpu_custom_call.1} parent=27 // pred_check
          %p1993 = pneg %p229
        $region46: #{tpu_custom_call.1} parent=27 // pred_check_branch
          %1995 = sbr.rel (%p1993) target = $region48
        $region47: #{tpu_custom_call.1} parent=27 // pred_region
          %v1996 = vld [vmem:[#allocation2] sm:$0xff]
          %v1997 = vld [vmem:[#allocation2 + $0x8] sm:$0xff]
          %v1998 = vld [vmem:[#allocation2 + $0x10] sm:$0xff]
          %v1999 = vld [vmem:[#allocation2 + $0x18] sm:$0xff]
          %v2000 = vld [vmem:[#allocation2 + $0x20] sm:$0xff]
          %v2001 = vld [vmem:[#allocation2 + $0x28] sm:$0xff]
          %v2002 = vld [vmem:[#allocation2 + $0x30] sm:$0xff]
          %v2003 = vld [vmem:[#allocation2 + $0x38] sm:$0xff]
          %v2004 = vld [vmem:[#allocation2 + $0x40] sm:$0xff]
          %v2005 = vld [vmem:[#allocation2 + $0x48] sm:$0xff]
          %v2006 = vld [vmem:[#allocation2 + $0x50] sm:$0xff]
          %v2007 = vld [vmem:[#allocation2 + $0x58] sm:$0xff]
          %v2008 = vld [vmem:[#allocation2 + $0x60] sm:$0xff]
          %v2009 = vld [vmem:[#allocation2 + $0x68] sm:$0xff]
          %v2010 = vld [vmem:[#allocation2 + $0x70] sm:$0xff]
          %v2011 = vld [vmem:[#allocation2 + $0x78] sm:$0x1]
          %v2012 = vld [vmem:[#allocation2 + $0x80] sm:$0x1]
          %v2013 = vld [vmem:[#allocation2 + $0x88] sm:$0x1]
          %v2014 = vld [vmem:[#allocation2 + $0x90] sm:$0x1]
          %v2015 = vld [vmem:[#allocation2 + $0x98] sm:$0x1]
          %v2016 = vadd.f32 %v1996, %v1997
          %v2017 = vadd.f32 %v2016, %v1998
          %v2018 = vadd.f32 %v2017, %v1999
          %v2019 = vadd.f32 %v2018, %v2000
          %v2020 = vadd.f32 %v2019, %v2001
          %v2021 = vadd.f32 %v2020, %v2002
          %v2022 = vadd.f32 %v2021, %v2003
          %v2023 = vadd.f32 %v2022, %v2004
          %v2024 = vadd.f32 %v2023, %v2005
          %v2025 = vadd.f32 %v2024, %v2006
          %v2026 = vadd.f32 %v2025, %v2007
          %v2027 = vadd.f32 %v2026, %v2008
          %v2028 = vadd.f32 %v2027, %v2009
          %v2029 = vadd.f32 %v2028, %v2010
          %vm2030 = vcmask 1040384
          %v2031 = vsel %vm2030, %v2011, 0.0
          %v2032 = vadd.f32 %v2029, %v2031
          %v2033 = vsel %vm2030, %v2012, 0.0
          %v2034 = vadd.f32 %v2032, %v2033
          %v2035 = vsel %vm2030, %v2013, 0.0
          %v2036 = vadd.f32 %v2034, %v2035
          %v2037 = vsel %vm2030, %v2014, 0.0
          %v2038 = vadd.f32 %v2036, %v2037
          %v2039 = vsel %vm2030, %v2015, 0.0
          %v2040 = vadd.f32 %v2038, %v2039
          %2041 = vadd.xlane.f32.xlu0 %v2040
          %v2042 = vpop.xlane.xlu0 %2041
          %v2043 = vrot.slane %v2042, 4
          %v2044 = vadd.f32 %v2042, %v2043
          %v2045 = vrot.slane %v2044, 2
          %v2046 = vadd.f32 %v2044, %v2045
          %v2047 = vrot.slane %v2046, 1
          %v2048 = vadd.f32 %v2046, %v2047
          %s2049 = vtos %v2048
          %v2050 = vstv %s2049
          %v2051 = vadd.f32 %v2050, 0.0
          %vm2052 = vcmask 0
          %2053 = vst.msk [vmem:[%s228] sm:$0x1] %vm2052, %v2051
        $region48: #{tpu_custom_call.1} parent=27 // pred_fallthru
          _
        %p2054 = scmp.lt.s32.totalorder %s20, 1
        %s2055 = scalar_select %p2054, %s20, 1
        %s2056 = scalar_lea.vmem %s2, %s2055
        // Predicated region
        $region49: #{tpu_custom_call.1} parent=27 // pred_check
          %p2057 = pneg %p110
        $region50: #{tpu_custom_call.1} parent=27 // pred_check_branch
          %2059 = sbr.rel (%p2057) target = $region52
        $region51: #{tpu_custom_call.1} parent=27 // pred_region
          _
        $region52: #{tpu_custom_call.1} parent=27 // pred_fallthru
          _
      $region28: #{tpu_custom_call.1} parent=5 // pred_fallthru
        _
      %p2060 = scmp.le.s32.totalorder 2, %s11
      // Predicated region
      $region53: #{tpu_custom_call.1} parent=5 // pred_check
        %p2061 = pneg %p2060
      $region54: #{tpu_custom_call.1} parent=5 // pred_check_branch
        %2063 = sbr.rel (%p2061) target = $region56
      $region55: #{tpu_custom_call.1} parent=5 // pred_region
        %s2064 = ssub.s32 %s11, 2
        // Predicated region
        $region57: #{tpu_custom_call.1} parent=55 // pred_check
          %p2065 = pneg %p116
        $region58: #{tpu_custom_call.1} parent=55 // pred_check_branch
          %2067 = sbr.rel (%p2065) target = $region60
        $region59: #{tpu_custom_call.1} parent=55 // pred_region
          %p2068 = scmp.lt.s32.totalorder %s22, 1
          %s2069 = scalar_select %p2068, %s22, 1
          %s2070 = scalar_lea.vmem %s2, %s2069
        $region60: #{tpu_custom_call.1} parent=55 // pred_fallthru
          _
      $region56: #{tpu_custom_call.1} parent=5 // pred_fallthru
        _
    $region6: #{tpu_custom_call.1} parent=1 // loop_footer
      %s15 = sadd.s32 1, %s11
    $region7: #{tpu_custom_call.1} parent=1 // loop_footer_branch
      %10 = sbr.rel target = $region3
    $region8: #{tpu_custom_call.1} parent=1 // loop_exit
      _
    %2071 = vsyncpa [#allocation4], 1
    %s2072 = scalar_lea.sflag [#allocation4], 1
    %2073 = vsyncpa %s2072, 1

</llo_original>
